<compile_context>
chip_gen: v7x
topology: tpu7x:2x2x1
jax: 0.10.0
libtpu: 0.0.40
codegen_flags: <defaults>
</compile_context>

<pallas_src>
import functools

import jax
import jax.numpy as jnp
from jax.experimental import pallas as pl
from jax.experimental.pallas import tpu as pltpu


# ----------------------------- VMEM budget -----------------------------

def _vmem_limit_bytes():
    """Generation-aware scoped-VMEM limit (~3/4 of physical VMEM)."""
    cap = 64 * 1024 * 1024
    try:
        cap = int(pltpu.get_tpu_info().vmem_capacity_bytes)
    except Exception:
        pass
    return max(32 * 1024 * 1024, (cap * 3) // 4)


# ----------------------------- Pallas kernel -----------------------------

def _transformer_block_kernel(*refs, num_heads, has_conv):
    if has_conv:
        (x_ref, wc_ref, scale_ref, bias_ref, wl_ref, bl_ref,
         wqkv_ref, bqkv_ref, wout_ref, bout_ref, wfc_ref,
         o_ref, heads_ref) = refs
    else:
        (x_ref, wl_ref, bl_ref,
         wqkv_ref, bqkv_ref, wout_ref, bout_ref, wfc_ref,
         o_ref, heads_ref) = refs

    l = pl.program_id(1)

    # ---- stage 0 (once per batch element): conv+BN+SiLU (optional) + embed ----
    @pl.when(l == 0)
    def _():
        if has_conv:
            xb = x_ref[0].astype(jnp.bfloat16)                        # (L, C1)
            y = jnp.dot(xb, wc_ref[...], preferred_element_type=jnp.float32)
            y = y * scale_ref[...] + bias_ref[...]                    # folded BN
            p = y * jax.nn.sigmoid(y)                                 # SiLU (f32)
        else:
            p = x_ref[0]                                              # (L, C) f32
        e = jnp.dot(p.astype(jnp.bfloat16), wl_ref[...],
                    preferred_element_type=jnp.float32) + bl_ref[...]
        o_ref[0] = p + e                                              # x = p + Linear(p)

    # ---- transformer layer l; activation slab resident in the output block ----
    x = o_ref[0]                                                      # (L, C) f32
    L, C = x.shape
    D = C // num_heads

    # fused QKV projection (bf16 operands, f32 accumulation; 1/sqrt(D) pre-folded)
    qkv = jnp.dot(x.astype(jnp.bfloat16), wqkv_ref[0],
                  preferred_element_type=jnp.float32) + bqkv_ref[0]   # (L, 3C)
    Q = qkv[:, 0 * C:1 * C]
    K = qkv[:, 1 * C:2 * C]
    V = qkv[:, 2 * C:3 * C]

    # Per-head attention.  Head outputs are written at static column offsets into
    # a bf16 scratch so the out-projection is one full-width (K = C) matmul.
    # (num_heads is small; for large H move this to lax.fori_loop to bound live
    #  ranges of the (L, L) temporaries.)
    for h in range(num_heads):
        Qh = Q[:, h * D:(h + 1) * D].astype(jnp.bfloat16)
        Kh = K[:, h * D:(h + 1) * D].astype(jnp.bfloat16)
        Vh = V[:, h * D:(h + 1) * D].astype(jnp.bfloat16)
        s = jax.lax.dot_general(Qh, Kh, (((1,), (1,)), ((), ())),
                                preferred_element_type=jnp.float32)   # (L, L)
        s = s - jnp.max(s, axis=-1, keepdims=True)
        e = jnp.exp(s)
        r = pl.reciprocal(jnp.sum(e, axis=-1, keepdims=True), approx=True)
        oh = jnp.dot(e.astype(jnp.bfloat16), Vh,
                     preferred_element_type=jnp.float32) * r          # (L, D)
        heads_ref[:, h * D:(h + 1) * D] = oh.astype(jnp.bfloat16)

    attn = jnp.dot(heads_ref[...], wout_ref[0],
                   preferred_element_type=jnp.float32)                # (L, C)
    x = attn + bout_ref[0] + x                                        # bias + residual

    # feed-forward (fused fc2(fc1(x)) == x @ wfc) + residual
    y = jnp.dot(x.astype(jnp.bfloat16), wfc_ref[0],
                preferred_element_type=jnp.float32)
    o_ref[0] = y + x


# ----------------------------- wrapper -----------------------------

def transformer_block_call(x_blc, prep, num_heads):
    B, L, Cin = x_blc.shape
    C = prep["lin_w"].shape[0]
    NL = prep["wqkv"].shape[0]
    has_conv = "conv_w" in prep

    kern = functools.partial(_transformer_block_kernel,
                             num_heads=num_heads, has_conv=has_conv)

    in_specs = [pl.BlockSpec((1, L, Cin), lambda b, l: (b, 0, 0))]    # x (once per b)
    operands = [x_blc]
    if has_conv:
        in_specs += [
            pl.BlockSpec((Cin, C), lambda b, l: (0, 0)),              # conv weight (resident)
            pl.BlockSpec((1, C), lambda b, l: (0, 0)),                # folded BN scale
            pl.BlockSpec((1, C), lambda b, l: (0, 0)),                # folded BN bias
        ]
        operands += [prep["conv_w"], prep["bn_scale"], prep["bn_bias"]]
    in_specs += [
        pl.BlockSpec((C, C), lambda b, l: (0, 0)),                    # embed linear W
        pl.BlockSpec((1, C), lambda b, l: (0, 0)),                    # embed linear b
        pl.BlockSpec((1, C, 3 * C), lambda b, l: (l, 0, 0)),          # fused QKV W
        pl.BlockSpec((1, 1, 3 * C), lambda b, l: (l, 0, 0)),          # fused QKV b
        pl.BlockSpec((1, C, C), lambda b, l: (l, 0, 0)),              # out-proj W
        pl.BlockSpec((1, 1, C), lambda b, l: (l, 0, 0)),              # out-proj b
        pl.BlockSpec((1, C, C), lambda b, l: (l, 0, 0)),              # fused FFN W
    ]
    operands += [prep["lin_w"], prep["lin_b"], prep["wqkv"], prep["bqkv"],
                 prep["wout"], prep["bout"], prep["wfc"]]

    return pl.pallas_call(
        kern,
        out_shape=jax.ShapeDtypeStruct((B, L, C), jnp.float32),
        grid=(B, NL),
        in_specs=in_specs,
        out_specs=pl.BlockSpec((1, L, C), lambda b, l: (b, 0, 0)),
        scratch_shapes=[pltpu.VMEM((L, C), jnp.bfloat16)],            # concat'd head outputs
        compiler_params=pltpu.CompilerParams(
            dimension_semantics=("parallel", "arbitrary"),
            vmem_limit_bytes=_vmem_limit_bytes()),
    )(*operands)


def transformer_block_forward(x_nchw, prep, num_heads):
    B, C1, H, W = x_nchw.shape
    L = H * W
    # NCHW -> (B, L, C1)   (matches p = x.flatten(2).unsqueeze(0).transpose(0,3).squeeze(3))
    x_blc = x_nchw.reshape(B, C1, L).transpose(0, 2, 1)
    out = transformer_block_call(x_blc, prep, num_heads)              # (B, L, C2)
    C2 = out.shape[-1]
    # (B, L, C2) -> NCHW   (matches unsqueeze(3).transpose(0,3).reshape(b, c2, w, h))
    return out.transpose(0, 2, 1).reshape(B, C2, H, W)


# ----------------------------- host-side weight fusion -----------------------------

def prepare_params(params, num_heads):
    """One-time host-side algebraic fusion + bf16 cast of matmul weights."""
    hp = jax.lax.Precision.HIGHEST
    prep = {}
    if "conv_w" in params:
        scale = (params["bn_gamma"] / jnp.sqrt(params["bn_var"] + 1e-5)).reshape(1, -1)
        bias = params["bn_beta"].reshape(1, -1) - params["bn_mean"].reshape(1, -1) * scale
        prep["conv_w"] = params["conv_w"].astype(jnp.bfloat16)
        prep["bn_scale"] = scale.astype(jnp.float32)
        prep["bn_bias"] = bias.astype(jnp.float32)
    prep["lin_w"] = params["lin_w"].astype(jnp.bfloat16)
    prep["lin_b"] = params["lin_b"].astype(jnp.float32)

    C = params["lin_w"].shape[0]
    assert C % num_heads == 0, "embed dim must be divisible by num_heads"
    att_scale = (C // num_heads) ** -0.5

    wqkv, bqkv, wout, bout, wfc = [], [], [], [], []
    for lp in params["layers"]:
        wq_f = jnp.dot(lp["wq"], lp["w_in"][:, :C], precision=hp) * att_scale
        wk_f = jnp.dot(lp["wk"], lp["w_in"][:, C:2 * C], precision=hp)
        wv_f = jnp.dot(lp["wv"], lp["w_in"][:, 2 * C:], precision=hp)
        wqkv.append(jnp.concatenate([wq_f, wk_f, wv_f], axis=1))          # (C, 3C)
        bqkv.append(jnp.concatenate([lp["b_in"][:, :C] * att_scale,
                                     lp["b_in"][:, C:2 * C],
                                     lp["b_in"][:, 2 * C:]], axis=1))     # (1, 3C)
        wout.append(lp["w_out"])
        bout.append(lp["b_out"])
        wfc.append(jnp.dot(lp["wfc1"], lp["wfc2"], precision=hp))         # (C, C)

    prep["wqkv"] = jnp.stack(wqkv).astype(jnp.bfloat16)
    prep["bqkv"] = jnp.stack(bqkv).astype(jnp.float32)
    prep["wout"] = jnp.stack(wout).astype(jnp.bfloat16)
    prep["bout"] = jnp.stack(bout).astype(jnp.float32)
    prep["wfc"] = jnp.stack(wfc).astype(jnp.bfloat16)
    return prep


# ----------------------------- params & reference -----------------------------

def init_params(key, c1, c2, num_heads, num_layers):
    cnt = [0]

    def nrm(shape, scale=0.1):
        cnt[0] += 1
        return scale * jax.random.normal(jax.random.fold_in(key, cnt[0]), shape, jnp.float32)

    params = {}
    if c1 != c2:
        params["conv_w"] = nrm((c1, c2), 0.2)          # 1x1 conv weight, (Cin, Cout)
        params["bn_gamma"] = 1.0 + nrm((c2,), 0.1)
        params["bn_beta"] = nrm((c2,), 0.1)
        params["bn_mean"] = nrm((c2,), 0.1)
        params["bn_var"] = 0.5 + jnp.abs(nrm((c2,), 0.2))
    params["lin_w"] = nrm((c2, c2))
    params["lin_b"] = nrm((1, c2))
    layers = []
    for _ in range(num_layers):
        layers.append({
            "wq": nrm((c2, c2)), "wk": nrm((c2, c2)), "wv": nrm((c2, c2)),
            "w_in": nrm((c2, 3 * c2)), "b_in": nrm((1, 3 * c2)),
            "w_out": nrm((c2, c2)), "b_out": nrm((1, c2)),
            "wfc1": nrm((c2, c2)), "wfc2": nrm((c2, c2)),
        })
    params["layers"] = layers
    return params


def ref_forward(x_nchw, params, num_heads):
    hp = jax.lax.Precision.HIGHEST
    B, C1, H, W = x_nchw.shape
    L = H * W
    x = x_nchw.reshape(B, C1, L).transpose(0, 2, 1)     # (B, L, C1)
    if "conv_w" in params:
        y = jnp.einsum("blc,cd->bld", x, params["conv_w"], precision=hp)
        scale = params["bn_gamma"] / jnp.sqrt(params["bn_var"] + 1e-5)
        bias = params["bn_beta"] - params["bn_mean"] * scale
        y = y * scale + bias
        x = y * jax.nn.sigmoid(y)
    C2 = x.shape[-1]
    D = C2 // num_heads
    x = x + (jnp.einsum("blc,cd->bld", x, params["lin_w"], precision=hp) + params["lin_b"])
    for lp in params["layers"]:
        q = jnp.einsum("blc,cd->bld", x, lp["wq"], precision=hp)
        k = jnp.einsum("blc,cd->bld", x, lp["wk"], precision=hp)
        v = jnp.einsum("blc,cd->bld", x, lp["wv"], precision=hp)
        Q = jnp.einsum("blc,cd->bld", q, lp["w_in"][:, :C2], precision=hp) + lp["b_in"][:, :C2]
        K = jnp.einsum("blc,cd->bld", k, lp["w_in"][:, C2:2 * C2], precision=hp) + lp["b_in"][:, C2:2 * C2]
        V = jnp.einsum("blc,cd->bld", v, lp["w_in"][:, 2 * C2:], precision=hp) + lp["b_in"][:, 2 * C2:]
        Qh = Q.reshape(B, L, num_heads, D) * (D ** -0.5)
        Kh = K.reshape(B, L, num_heads, D)
        Vh = V.reshape(B, L, num_heads, D)
        s = jnp.einsum("blhd,bmhd->bhlm", Qh, Kh, precision=hp)
        p = jax.nn.softmax(s, axis=-1)
        o = jnp.einsum("bhlm,bmhd->blhd", p, Vh, precision=hp).reshape(B, L, C2)
        o = jnp.einsum("blc,cd->bld", o, lp["w_out"], precision=hp) + lp["b_out"]
        x = o + x
        y = jnp.einsum("blc,cd->bld", x, lp["wfc1"], precision=hp)
        y = jnp.einsum("blc,cd->bld", y, lp["wfc2"], precision=hp)
        x = y + x
    return x.transpose(0, 2, 1).reshape(B, C2, H, W)


# ----------------------------- main -----------------------------

if __name__ == "__main__":
    key = jax.random.PRNGKey(0)
    B, C1, C2, H, W = 2, 16, 32, 8, 8          # c1 != c2 -> conv path is exercised
    num_heads, num_layers = 4, 2

    # conv path (c1 != c2)
    params = init_params(key, C1, C2, num_heads, num_layers)
    prep = prepare_params(params, num_heads)
    x = jax.random.normal(jax.random.fold_in(key, 12345), (B, C1, H, W), jnp.float32)
    out = jax.block_until_ready(transformer_block_forward(x, prep, num_heads))
    ref = ref_forward(x, params, num_heads)
    err = float(jnp.max(jnp.abs(out - ref)))
    assert out.shape == (B, C2, H, W), out.shape
    # tolerance loosened vs f32/HIGHEST reference: matmul operands are bf16
    # (f32 accumulation) and weights are algebraically pre-fused on the host.
    assert err < 1e-1, f"max abs err vs reference (conv path): {err}"

    # identity path (c1 == c2, conv is None in the PyTorch module)
    params2 = init_params(jax.random.fold_in(key, 7), C2, C2, num_heads, num_layers)
    prep2 = prepare_params(params2, num_heads)
    x2 = jax.random.normal(jax.random.fold_in(key, 999), (B, C2, H, W), jnp.float32)
    out2 = jax.block_until_ready(transformer_block_forward(x2, prep2, num_heads))
    ref2 = ref_forward(x2, params2, num_heads)
    err2 = float(jnp.max(jnp.abs(out2 - ref2)))
    assert out2.shape == (B, C2, H, W), out2.shape
    assert err2 < 1e-1, f"max abs err vs reference (no-conv path): {err2}"

    print("KERNEL_OK")
</pallas_src>

<mosaic_0001>
module attributes {stable_mosaic.version = 11 : i64} {
  func.func @_transformer_block_kernel(%arg0: i32, %arg1: i32, %arg2: memref<1x64x16xf32, #tpu.memory_space<vmem>>, %arg3: memref<16x32xbf16, #tpu.memory_space<vmem>>, %arg4: memref<1x32xf32, #tpu.memory_space<vmem>>, %arg5: memref<1x32xf32, #tpu.memory_space<vmem>>, %arg6: memref<32x32xbf16, #tpu.memory_space<vmem>>, %arg7: memref<1x32xf32, #tpu.memory_space<vmem>>, %arg8: memref<1x32x96xbf16, #tpu.memory_space<vmem>>, %arg9: memref<1x1x96xf32, #tpu.memory_space<vmem>>, %arg10: memref<1x32x32xbf16, #tpu.memory_space<vmem>>, %arg11: memref<1x1x32xf32, #tpu.memory_space<vmem>>, %arg12: memref<1x32x32xbf16, #tpu.memory_space<vmem>>, %arg13: memref<1x64x32xf32, #tpu.memory_space<vmem>>, %arg14: memref<64x32xbf16, #tpu.memory_space<vmem>>) attributes {dimension_semantics = [#tpu.dimension_semantics<parallel>, #tpu.dimension_semantics<arbitrary>], iteration_bounds = array<i64: 2, 2>, scalar_prefetch = 0 : i64, scratch_operands = 1 : i64, tpu.core_type = #tpu.core_type<tc>, window_params = [{transform_indices = @transform_0, window_bounds = array<i64: 1, 64, 16>}, {pipeline_mode = #tpu.pipeline_mode<synchronous>, transform_indices = @transform_1, window_bounds = array<i64: 16, 32>}, {pipeline_mode = #tpu.pipeline_mode<synchronous>, transform_indices = @transform_2, window_bounds = array<i64: 1, 32>}, {pipeline_mode = #tpu.pipeline_mode<synchronous>, transform_indices = @transform_3, window_bounds = array<i64: 1, 32>}, {pipeline_mode = #tpu.pipeline_mode<synchronous>, transform_indices = @transform_4, window_bounds = array<i64: 32, 32>}, {pipeline_mode = #tpu.pipeline_mode<synchronous>, transform_indices = @transform_5, window_bounds = array<i64: 1, 32>}, {transform_indices = @transform_6, window_bounds = array<i64: 1, 32, 96>}, {transform_indices = @transform_7, window_bounds = array<i64: 1, 1, 96>}, {transform_indices = @transform_8, window_bounds = array<i64: 1, 32, 32>}, {transform_indices = @transform_9, window_bounds = array<i64: 1, 1, 32>}, {transform_indices = @transform_10, window_bounds = array<i64: 1, 32, 32>}, {transform_indices = @transform_11, window_bounds = array<i64: 1, 64, 32>}]} {
    %c0_i32 = arith.constant 0 : i32
    %0 = arith.cmpi eq, %arg1, %c0_i32 : i32
    %1 = arith.extui %0 : i1 to i32
    %c0_i32_0 = arith.constant 0 : i32
    %2 = arith.cmpi ne, %1, %c0_i32_0 : i32
    scf.if %2 {
      %c0_46 = arith.constant 0 : index
      %c0_47 = arith.constant 0 : index
      %c0_48 = arith.constant 0 : index
      %117 = vector.load %arg2[%c0_46, %c0_47, %c0_48] : memref<1x64x16xf32, #tpu.memory_space<vmem>>, vector<1x64x16xf32>
      %118 = vector.shape_cast %117 : vector<1x64x16xf32> to vector<64x16xf32>
      %119 = arith.truncf %118 : vector<64x16xf32> to vector<64x16xbf16>
      %c0_49 = arith.constant 0 : index
      %c0_50 = arith.constant 0 : index
      %120 = vector.load %arg3[%c0_49, %c0_50] : memref<16x32xbf16, #tpu.memory_space<vmem>>, vector<16x32xbf16>
      %cst_51 = arith.constant dense<0.000000e+00> : vector<64x32xf32>
      %121 = tpu.matmul %119, %120, %cst_51 {dimension_numbers = #tpu.dot_dimension_numbers<[1], [0], [0], [1], [0, 0, 1, 1], [], []>} : vector<64x16xbf16>, vector<16x32xbf16>, vector<64x32xf32> -> vector<64x32xf32>
      %c0_52 = arith.constant 0 : index
      %c0_53 = arith.constant 0 : index
      %122 = vector.load %arg4[%c0_52, %c0_53] : memref<1x32xf32, #tpu.memory_space<vmem>>, vector<1x32xf32>
      %123 = vector.broadcast %122 : vector<1x32xf32> to vector<64x32xf32>
      %124 = arith.mulf %121, %123 : vector<64x32xf32>
      %c0_54 = arith.constant 0 : index
      %c0_55 = arith.constant 0 : index
      %125 = vector.load %arg5[%c0_54, %c0_55] : memref<1x32xf32, #tpu.memory_space<vmem>>, vector<1x32xf32>
      %126 = vector.broadcast %125 : vector<1x32xf32> to vector<64x32xf32>
      %127 = arith.addf %124, %126 : vector<64x32xf32>
      %128 = arith.negf %127 : vector<64x32xf32>
      %129 = math.exp %128 : vector<64x32xf32>
      %cst_56 = arith.constant 1.000000e+00 : f32
      %130 = vector.broadcast %cst_56 : f32 to vector<64x32xf32>
      %131 = arith.addf %130, %129 : vector<64x32xf32>
      %132 = arith.divf %130, %131 : vector<64x32xf32>
      %133 = arith.mulf %127, %132 : vector<64x32xf32>
      %134 = arith.truncf %133 : vector<64x32xf32> to vector<64x32xbf16>
      %c0_57 = arith.constant 0 : index
      %c0_58 = arith.constant 0 : index
      %135 = vector.load %arg6[%c0_57, %c0_58] : memref<32x32xbf16, #tpu.memory_space<vmem>>, vector<32x32xbf16>
      %cst_59 = arith.constant dense<0.000000e+00> : vector<64x32xf32>
      %136 = tpu.matmul %134, %135, %cst_59 {dimension_numbers = #tpu.dot_dimension_numbers<[1], [0], [0], [1], [0, 0, 1, 1], [], []>} : vector<64x32xbf16>, vector<32x32xbf16>, vector<64x32xf32> -> vector<64x32xf32>
      %c0_60 = arith.constant 0 : index
      %c0_61 = arith.constant 0 : index
      %137 = vector.load %arg7[%c0_60, %c0_61] : memref<1x32xf32, #tpu.memory_space<vmem>>, vector<1x32xf32>
      %138 = vector.broadcast %137 : vector<1x32xf32> to vector<64x32xf32>
      %139 = arith.addf %136, %138 : vector<64x32xf32>
      %140 = arith.addf %133, %139 : vector<64x32xf32>
      %c0_62 = arith.constant 0 : index
      %c0_63 = arith.constant 0 : index
      %c0_64 = arith.constant 0 : index
      %141 = vector.load %arg13[%c0_62, %c0_63, %c0_64] : memref<1x64x32xf32, #tpu.memory_space<vmem>>, vector<1x64x32xf32>
      %142 = vector.shape_cast %141 : vector<1x64x32xf32> to vector<64x32xf32>
      %143 = vector.shape_cast %140 : vector<64x32xf32> to vector<1x64x32xf32>
      tpu.vector_store %arg13[%c0_62, %c0_63, %c0_64], %143 {strides = array<i32>} : memref<1x64x32xf32, #tpu.memory_space<vmem>>, vector<1x64x32xf32>,
    } else {
    }
    %c0 = arith.constant 0 : index
    %c0_1 = arith.constant 0 : index
    %c0_2 = arith.constant 0 : index
    %3 = vector.load %arg13[%c0, %c0_1, %c0_2] : memref<1x64x32xf32, #tpu.memory_space<vmem>>, vector<1x64x32xf32>
    %4 = vector.shape_cast %3 : vector<1x64x32xf32> to vector<64x32xf32>
    %5 = arith.truncf %4 : vector<64x32xf32> to vector<64x32xbf16>
    %c0_3 = arith.constant 0 : index
    %c0_4 = arith.constant 0 : index
    %c0_5 = arith.constant 0 : index
    %6 = vector.load %arg8[%c0_3, %c0_4, %c0_5] : memref<1x32x96xbf16, #tpu.memory_space<vmem>>, vector<1x32x96xbf16>
    %7 = vector.shape_cast %6 : vector<1x32x96xbf16> to vector<32x96xbf16>
    %cst = arith.constant dense<0.000000e+00> : vector<64x96xf32>
    %8 = tpu.matmul %5, %7, %cst {dimension_numbers = #tpu.dot_dimension_numbers<[1], [0], [0], [1], [0, 0, 1, 1], [], []>} : vector<64x32xbf16>, vector<32x96xbf16>, vector<64x96xf32> -> vector<64x96xf32>
    %c0_6 = arith.constant 0 : index
    %c0_7 = arith.constant 0 : index
    %c0_8 = arith.constant 0 : index
    %9 = vector.load %arg9[%c0_6, %c0_7, %c0_8] : memref<1x1x96xf32, #tpu.memory_space<vmem>>, vector<1x1x96xf32>
    %10 = vector.shape_cast %9 : vector<1x1x96xf32> to vector<1x96xf32>
    %11 = vector.broadcast %10 : vector<1x96xf32> to vector<64x96xf32>
    %12 = arith.addf %8, %11 : vector<64x96xf32>
    %13 = vector.extract_strided_slice %12 {offsets = [0, 0], sizes = [64, 32], strides = [1, 1]} : vector<64x96xf32> to vector<64x32xf32>
    %14 = vector.extract_strided_slice %12 {offsets = [0, 32], sizes = [64, 32], strides = [1, 1]} : vector<64x96xf32> to vector<64x32xf32>
    %15 = vector.extract_strided_slice %12 {offsets = [0, 64], sizes = [64, 32], strides = [1, 1]} : vector<64x96xf32> to vector<64x32xf32>
    %16 = vector.extract_strided_slice %13 {offsets = [0, 0], sizes = [64, 8], strides = [1, 1]} : vector<64x32xf32> to vector<64x8xf32>
    %17 = arith.truncf %16 : vector<64x8xf32> to vector<64x8xbf16>
    %18 = vector.extract_strided_slice %14 {offsets = [0, 0], sizes = [64, 8], strides = [1, 1]} : vector<64x32xf32> to vector<64x8xf32>
    %19 = arith.truncf %18 : vector<64x8xf32> to vector<64x8xbf16>
    %20 = vector.extract_strided_slice %15 {offsets = [0, 0], sizes = [64, 8], strides = [1, 1]} : vector<64x32xf32> to vector<64x8xf32>
    %21 = arith.truncf %20 : vector<64x8xf32> to vector<64x8xbf16>
    %cst_9 = arith.constant dense<0.000000e+00> : vector<64x64xf32>
    %22 = tpu.matmul %17, %19, %cst_9 {dimension_numbers = #tpu.dot_dimension_numbers<[1], [1], [0], [0], [0, 0, 1, 0], [], []>} : vector<64x8xbf16>, vector<64x8xbf16>, vector<64x64xf32> -> vector<64x64xf32>
    %cst_10 = arith.constant dense<0xFF800000> : vector<64xf32>
    %23 = vector.multi_reduction <maximumf>, %22, %cst_10 [1] : vector<64x64xf32> to vector<64xf32>
    %24 = vector.shape_cast %23 : vector<64xf32> to vector<64x1xf32>
    %25 = vector.broadcast %24 : vector<64x1xf32> to vector<64x64xf32>
    %26 = arith.subf %22, %25 : vector<64x64xf32>
    %27 = math.exp %26 : vector<64x64xf32>
    %cst_11 = arith.constant dense<0.000000e+00> : vector<64xf32>
    %28 = vector.multi_reduction <add>, %27, %cst_11 [1] : vector<64x64xf32> to vector<64xf32>
    %29 = vector.shape_cast %28 : vector<64xf32> to vector<64x1xf32>
    %30 = tpu.reciprocal %29 {approx = true} : vector<64x1xf32> -> vector<64x1xf32>
    %31 = arith.truncf %27 : vector<64x64xf32> to vector<64x64xbf16>
    %cst_12 = arith.constant dense<0.000000e+00> : vector<64x8xf32>
    %32 = tpu.matmul %31, %21, %cst_12 {dimension_numbers = #tpu.dot_dimension_numbers<[1], [0], [0], [1], [0, 0, 1, 1], [], []>} : vector<64x64xbf16>, vector<64x8xbf16>, vector<64x8xf32> -> vector<64x8xf32>
    %33 = vector.broadcast %30 : vector<64x1xf32> to vector<64x8xf32>
    %34 = arith.mulf %32, %33 : vector<64x8xf32>
    %35 = arith.truncf %34 : vector<64x8xf32> to vector<64x8xbf16>
    %c0_13 = arith.constant 0 : index
    %c0_14 = arith.constant 0 : index
    %36 = vector.load %arg14[%c0_13, %c0_14] : memref<64x32xbf16, #tpu.memory_space<vmem>>, vector<64x8xbf16>
    tpu.vector_store %arg14[%c0_13, %c0_14], %35 {strides = array<i32>} : memref<64x32xbf16, #tpu.memory_space<vmem>>, vector<64x8xbf16>,
    %37 = vector.extract_strided_slice %13 {offsets = [0, 8], sizes = [64, 8], strides = [1, 1]} : vector<64x32xf32> to vector<64x8xf32>
    %38 = arith.truncf %37 : vector<64x8xf32> to vector<64x8xbf16>
    %39 = vector.extract_strided_slice %14 {offsets = [0, 8], sizes = [64, 8], strides = [1, 1]} : vector<64x32xf32> to vector<64x8xf32>
    %40 = arith.truncf %39 : vector<64x8xf32> to vector<64x8xbf16>
    %41 = vector.extract_strided_slice %15 {offsets = [0, 8], sizes = [64, 8], strides = [1, 1]} : vector<64x32xf32> to vector<64x8xf32>
    %42 = arith.truncf %41 : vector<64x8xf32> to vector<64x8xbf16>
    %cst_15 = arith.constant dense<0.000000e+00> : vector<64x64xf32>
    %43 = tpu.matmul %38, %40, %cst_15 {dimension_numbers = #tpu.dot_dimension_numbers<[1], [1], [0], [0], [0, 0, 1, 0], [], []>} : vector<64x8xbf16>, vector<64x8xbf16>, vector<64x64xf32> -> vector<64x64xf32>
    %cst_16 = arith.constant dense<0xFF800000> : vector<64xf32>
    %44 = vector.multi_reduction <maximumf>, %43, %cst_16 [1] : vector<64x64xf32> to vector<64xf32>
    %45 = vector.shape_cast %44 : vector<64xf32> to vector<64x1xf32>
    %46 = vector.broadcast %45 : vector<64x1xf32> to vector<64x64xf32>
    %47 = arith.subf %43, %46 : vector<64x64xf32>
    %48 = math.exp %47 : vector<64x64xf32>
    %cst_17 = arith.constant dense<0.000000e+00> : vector<64xf32>
    %49 = vector.multi_reduction <add>, %48, %cst_17 [1] : vector<64x64xf32> to vector<64xf32>
    %50 = vector.shape_cast %49 : vector<64xf32> to vector<64x1xf32>
    %51 = tpu.reciprocal %50 {approx = true} : vector<64x1xf32> -> vector<64x1xf32>
    %52 = arith.truncf %48 : vector<64x64xf32> to vector<64x64xbf16>
    %cst_18 = arith.constant dense<0.000000e+00> : vector<64x8xf32>
    %53 = tpu.matmul %52, %42, %cst_18 {dimension_numbers = #tpu.dot_dimension_numbers<[1], [0], [0], [1], [0, 0, 1, 1], [], []>} : vector<64x64xbf16>, vector<64x8xbf16>, vector<64x8xf32> -> vector<64x8xf32>
    %54 = vector.broadcast %51 : vector<64x1xf32> to vector<64x8xf32>
    %55 = arith.mulf %53, %54 : vector<64x8xf32>
    %56 = arith.truncf %55 : vector<64x8xf32> to vector<64x8xbf16>
    %c0_19 = arith.constant 0 : index
    %c8 = arith.constant 8 : index
    %57 = vector.load %arg14[%c0_19, %c8] : memref<64x32xbf16, #tpu.memory_space<vmem>>, vector<64x8xbf16>
    tpu.vector_store %arg14[%c0_19, %c8], %56 {strides = array<i32>} : memref<64x32xbf16, #tpu.memory_space<vmem>>, vector<64x8xbf16>,
    %58 = vector.extract_strided_slice %13 {offsets = [0, 16], sizes = [64, 8], strides = [1, 1]} : vector<64x32xf32> to vector<64x8xf32>
    %59 = arith.truncf %58 : vector<64x8xf32> to vector<64x8xbf16>
    %60 = vector.extract_strided_slice %14 {offsets = [0, 16], sizes = [64, 8], strides = [1, 1]} : vector<64x32xf32> to vector<64x8xf32>
    %61 = arith.truncf %60 : vector<64x8xf32> to vector<64x8xbf16>
    %62 = vector.extract_strided_slice %15 {offsets = [0, 16], sizes = [64, 8], strides = [1, 1]} : vector<64x32xf32> to vector<64x8xf32>
    %63 = arith.truncf %62 : vector<64x8xf32> to vector<64x8xbf16>
    %cst_20 = arith.constant dense<0.000000e+00> : vector<64x64xf32>
    %64 = tpu.matmul %59, %61, %cst_20 {dimension_numbers = #tpu.dot_dimension_numbers<[1], [1], [0], [0], [0, 0, 1, 0], [], []>} : vector<64x8xbf16>, vector<64x8xbf16>, vector<64x64xf32> -> vector<64x64xf32>
    %cst_21 = arith.constant dense<0xFF800000> : vector<64xf32>
    %65 = vector.multi_reduction <maximumf>, %64, %cst_21 [1] : vector<64x64xf32> to vector<64xf32>
    %66 = vector.shape_cast %65 : vector<64xf32> to vector<64x1xf32>
    %67 = vector.broadcast %66 : vector<64x1xf32> to vector<64x64xf32>
    %68 = arith.subf %64, %67 : vector<64x64xf32>
    %69 = math.exp %68 : vector<64x64xf32>
    %cst_22 = arith.constant dense<0.000000e+00> : vector<64xf32>
    %70 = vector.multi_reduction <add>, %69, %cst_22 [1] : vector<64x64xf32> to vector<64xf32>
    %71 = vector.shape_cast %70 : vector<64xf32> to vector<64x1xf32>
    %72 = tpu.reciprocal %71 {approx = true} : vector<64x1xf32> -> vector<64x1xf32>
    %73 = arith.truncf %69 : vector<64x64xf32> to vector<64x64xbf16>
    %cst_23 = arith.constant dense<0.000000e+00> : vector<64x8xf32>
    %74 = tpu.matmul %73, %63, %cst_23 {dimension_numbers = #tpu.dot_dimension_numbers<[1], [0], [0], [1], [0, 0, 1, 1], [], []>} : vector<64x64xbf16>, vector<64x8xbf16>, vector<64x8xf32> -> vector<64x8xf32>
    %75 = vector.broadcast %72 : vector<64x1xf32> to vector<64x8xf32>
    %76 = arith.mulf %74, %75 : vector<64x8xf32>
    %77 = arith.truncf %76 : vector<64x8xf32> to vector<64x8xbf16>
    %c0_24 = arith.constant 0 : index
    %c16 = arith.constant 16 : index
    %78 = vector.load %arg14[%c0_24, %c16] : memref<64x32xbf16, #tpu.memory_space<vmem>>, vector<64x8xbf16>
    tpu.vector_store %arg14[%c0_24, %c16], %77 {strides = array<i32>} : memref<64x32xbf16, #tpu.memory_space<vmem>>, vector<64x8xbf16>,
    %79 = vector.extract_strided_slice %13 {offsets = [0, 24], sizes = [64, 8], strides = [1, 1]} : vector<64x32xf32> to vector<64x8xf32>
    %80 = arith.truncf %79 : vector<64x8xf32> to vector<64x8xbf16>
    %81 = vector.extract_strided_slice %14 {offsets = [0, 24], sizes = [64, 8], strides = [1, 1]} : vector<64x32xf32> to vector<64x8xf32>
    %82 = arith.truncf %81 : vector<64x8xf32> to vector<64x8xbf16>
    %83 = vector.extract_strided_slice %15 {offsets = [0, 24], sizes = [64, 8], strides = [1, 1]} : vector<64x32xf32> to vector<64x8xf32>
    %84 = arith.truncf %83 : vector<64x8xf32> to vector<64x8xbf16>
    %cst_25 = arith.constant dense<0.000000e+00> : vector<64x64xf32>
    %85 = tpu.matmul %80, %82, %cst_25 {dimension_numbers = #tpu.dot_dimension_numbers<[1], [1], [0], [0], [0, 0, 1, 0], [], []>} : vector<64x8xbf16>, vector<64x8xbf16>, vector<64x64xf32> -> vector<64x64xf32>
    %cst_26 = arith.constant dense<0xFF800000> : vector<64xf32>
    %86 = vector.multi_reduction <maximumf>, %85, %cst_26 [1] : vector<64x64xf32> to vector<64xf32>
    %87 = vector.shape_cast %86 : vector<64xf32> to vector<64x1xf32>
    %88 = vector.broadcast %87 : vector<64x1xf32> to vector<64x64xf32>
    %89 = arith.subf %85, %88 : vector<64x64xf32>
    %90 = math.exp %89 : vector<64x64xf32>
    %cst_27 = arith.constant dense<0.000000e+00> : vector<64xf32>
    %91 = vector.multi_reduction <add>, %90, %cst_27 [1] : vector<64x64xf32> to vector<64xf32>
    %92 = vector.shape_cast %91 : vector<64xf32> to vector<64x1xf32>
    %93 = tpu.reciprocal %92 {approx = true} : vector<64x1xf32> -> vector<64x1xf32>
    %94 = arith.truncf %90 : vector<64x64xf32> to vector<64x64xbf16>
    %cst_28 = arith.constant dense<0.000000e+00> : vector<64x8xf32>
    %95 = tpu.matmul %94, %84, %cst_28 {dimension_numbers = #tpu.dot_dimension_numbers<[1], [0], [0], [1], [0, 0, 1, 1], [], []>} : vector<64x64xbf16>, vector<64x8xbf16>, vector<64x8xf32> -> vector<64x8xf32>
    %96 = vector.broadcast %93 : vector<64x1xf32> to vector<64x8xf32>
    %97 = arith.mulf %95, %96 : vector<64x8xf32>
    %98 = arith.truncf %97 : vector<64x8xf32> to vector<64x8xbf16>
    %c0_29 = arith.constant 0 : index
    %c24 = arith.constant 24 : index
    %99 = vector.load %arg14[%c0_29, %c24] : memref<64x32xbf16, #tpu.memory_space<vmem>>, vector<64x8xbf16>
    tpu.vector_store %arg14[%c0_29, %c24], %98 {strides = array<i32>} : memref<64x32xbf16, #tpu.memory_space<vmem>>, vector<64x8xbf16>,
    %c0_30 = arith.constant 0 : index
    %c0_31 = arith.constant 0 : index
    %100 = vector.load %arg14[%c0_30, %c0_31] : memref<64x32xbf16, #tpu.memory_space<vmem>>, vector<64x32xbf16>
    %c0_32 = arith.constant 0 : index
    %c0_33 = arith.constant 0 : index
    %c0_34 = arith.constant 0 : index
    %101 = vector.load %arg10[%c0_32, %c0_33, %c0_34] : memref<1x32x32xbf16, #tpu.memory_space<vmem>>, vector<1x32x32xbf16>
    %102 = vector.shape_cast %101 : vector<1x32x32xbf16> to vector<32x32xbf16>
    %cst_35 = arith.constant dense<0.000000e+00> : vector<64x32xf32>
    %103 = tpu.matmul %100, %102, %cst_35 {dimension_numbers = #tpu.dot_dimension_numbers<[1], [0], [0], [1], [0, 0, 1, 1], [], []>} : vector<64x32xbf16>, vector<32x32xbf16>, vector<64x32xf32> -> vector<64x32xf32>
    %c0_36 = arith.constant 0 : index
    %c0_37 = arith.constant 0 : index
    %c0_38 = arith.constant 0 : index
    %104 = vector.load %arg11[%c0_36, %c0_37, %c0_38] : memref<1x1x32xf32, #tpu.memory_space<vmem>>, vector<1x1x32xf32>
    %105 = vector.shape_cast %104 : vector<1x1x32xf32> to vector<1x32xf32>
    %106 = vector.broadcast %105 : vector<1x32xf32> to vector<64x32xf32>
    %107 = arith.addf %103, %106 : vector<64x32xf32>
    %108 = arith.addf %107, %4 : vector<64x32xf32>
    %109 = arith.truncf %108 : vector<64x32xf32> to vector<64x32xbf16>
    %c0_39 = arith.constant 0 : index
    %c0_40 = arith.constant 0 : index
    %c0_41 = arith.constant 0 : index
    %110 = vector.load %arg12[%c0_39, %c0_40, %c0_41] : memref<1x32x32xbf16, #tpu.memory_space<vmem>>, vector<1x32x32xbf16>
    %111 = vector.shape_cast %110 : vector<1x32x32xbf16> to vector<32x32xbf16>
    %cst_42 = arith.constant dense<0.000000e+00> : vector<64x32xf32>
    %112 = tpu.matmul %109, %111, %cst_42 {dimension_numbers = #tpu.dot_dimension_numbers<[1], [0], [0], [1], [0, 0, 1, 1], [], []>} : vector<64x32xbf16>, vector<32x32xbf16>, vector<64x32xf32> -> vector<64x32xf32>
    %113 = arith.addf %112, %108 : vector<64x32xf32>
    %c0_43 = arith.constant 0 : index
    %c0_44 = arith.constant 0 : index
    %c0_45 = arith.constant 0 : index
    %114 = vector.load %arg13[%c0_43, %c0_44, %c0_45] : memref<1x64x32xf32, #tpu.memory_space<vmem>>, vector<1x64x32xf32>
    %115 = vector.shape_cast %114 : vector<1x64x32xf32> to vector<64x32xf32>
    %116 = vector.shape_cast %113 : vector<64x32xf32> to vector<1x64x32xf32>
    tpu.vector_store %arg13[%c0_43, %c0_44, %c0_45], %116 {strides = array<i32>} : memref<1x64x32xf32, #tpu.memory_space<vmem>>, vector<1x64x32xf32>,
    return
  }
  func.func @transform_0(%arg0: i32, %arg1: i32) -> (i32, i32, i32) {
    %c0_i32 = arith.constant 0 : i32
    %c0_i32_0 = arith.constant 0 : i32
    %c0_i32_1 = arith.constant 0 : i32
    return %arg0, %c0_i32, %c0_i32_0 : i32, i32, i32
  }
  func.func @transform_1(%arg0: i32, %arg1: i32) -> (i32, i32) {
    %c0_i32 = arith.constant 0 : i32
    %c0_i32_0 = arith.constant 0 : i32
    %c0_i32_1 = arith.constant 0 : i32
    return %c0_i32, %c0_i32_0 : i32, i32
  }
  func.func @transform_2(%arg0: i32, %arg1: i32) -> (i32, i32) {
    %c0_i32 = arith.constant 0 : i32
    %c0_i32_0 = arith.constant 0 : i32
    %c0_i32_1 = arith.constant 0 : i32
    return %c0_i32, %c0_i32_0 : i32, i32
  }
  func.func @transform_3(%arg0: i32, %arg1: i32) -> (i32, i32) {
    %c0_i32 = arith.constant 0 : i32
    %c0_i32_0 = arith.constant 0 : i32
    %c0_i32_1 = arith.constant 0 : i32
    return %c0_i32, %c0_i32_0 : i32, i32
  }
  func.func @transform_4(%arg0: i32, %arg1: i32) -> (i32, i32) {
    %c0_i32 = arith.constant 0 : i32
    %c0_i32_0 = arith.constant 0 : i32
    %c0_i32_1 = arith.constant 0 : i32
    return %c0_i32, %c0_i32_0 : i32, i32
  }
  func.func @transform_5(%arg0: i32, %arg1: i32) -> (i32, i32) {
    %c0_i32 = arith.constant 0 : i32
    %c0_i32_0 = arith.constant 0 : i32
    %c0_i32_1 = arith.constant 0 : i32
    return %c0_i32, %c0_i32_0 : i32, i32
  }
  func.func @transform_6(%arg0: i32, %arg1: i32) -> (i32, i32, i32) {
    %c0_i32 = arith.constant 0 : i32
    %c0_i32_0 = arith.constant 0 : i32
    %c0_i32_1 = arith.constant 0 : i32
    return %arg1, %c0_i32, %c0_i32_0 : i32, i32, i32
  }
  func.func @transform_7(%arg0: i32, %arg1: i32) -> (i32, i32, i32) {
    %c0_i32 = arith.constant 0 : i32
    %c0_i32_0 = arith.constant 0 : i32
    %c0_i32_1 = arith.constant 0 : i32
    return %arg1, %c0_i32, %c0_i32_0 : i32, i32, i32
  }
  func.func @transform_8(%arg0: i32, %arg1: i32) -> (i32, i32, i32) {
    %c0_i32 = arith.constant 0 : i32
    %c0_i32_0 = arith.constant 0 : i32
    %c0_i32_1 = arith.constant 0 : i32
    return %arg1, %c0_i32, %c0_i32_0 : i32, i32, i32
  }
  func.func @transform_9(%arg0: i32, %arg1: i32) -> (i32, i32, i32) {
    %c0_i32 = arith.constant 0 : i32
    %c0_i32_0 = arith.constant 0 : i32
    %c0_i32_1 = arith.constant 0 : i32
    return %arg1, %c0_i32, %c0_i32_0 : i32, i32, i32
  }
  func.func @transform_10(%arg0: i32, %arg1: i32) -> (i32, i32, i32) {
    %c0_i32 = arith.constant 0 : i32
    %c0_i32_0 = arith.constant 0 : i32
    %c0_i32_1 = arith.constant 0 : i32
    return %arg1, %c0_i32, %c0_i32_0 : i32, i32, i32
  }
  func.func @transform_11(%arg0: i32, %arg1: i32) -> (i32, i32, i32) {
    %c0_i32 = arith.constant 0 : i32
    %c0_i32_0 = arith.constant 0 : i32
    %c0_i32_1 = arith.constant 0 : i32
    return %arg0, %c0_i32, %c0_i32_0 : i32, i32, i32
  }
}

</mosaic_0001>

<llo_original>
// kernel: tpu_custom_call.1
$region0: #{tpu_custom_call.1}
  #allocation0 [shape = 'u32[]', space=smem, size = 0x4, offset = 0x4, fixed_abs, tag = 'smem constant byte address 0x4 - core index']
  #allocation1 [shape = 'u32[144,128]{1,0:T(1,128)}', space=vmem, size = 0x12000, scoped, tag = 'internal scratch']
  #allocation2 [shape = 'bf16[64,32]{1,0:T(16,128)(2,1)}', space=vmem, size = 0x4000, scoped, tag = 'scratch operand']
  %s0 = inlined_call_operand.vmem [shape: f32[2,64,16], index: 0, kind: input, shape index: {}]
  %s1 = inlined_call_operand.vmem [shape: bf16[16,32], index: 1, kind: input, shape index: {}]
  %s2 = inlined_call_operand.vmem [shape: f32[1,32], index: 2, kind: input, shape index: {}]
  %s3 = inlined_call_operand.vmem [shape: f32[1,32], index: 3, kind: input, shape index: {}]
  %s4 = inlined_call_operand.vmem [shape: bf16[32,32], index: 4, kind: input, shape index: {}]
  %s5 = inlined_call_operand.vmem [shape: f32[1,32], index: 5, kind: input, shape index: {}]
  %s6 = inlined_call_operand.vmem [shape: bf16[2,32,96], index: 6, kind: input, shape index: {}]
  %s7 = inlined_call_operand.vmem [shape: f32[2,1,96], index: 7, kind: input, shape index: {}]
  %s8 = inlined_call_operand.vmem [shape: bf16[2,32,32], index: 8, kind: input, shape index: {}]
  %s9 = inlined_call_operand.vmem [shape: f32[2,1,32], index: 9, kind: input, shape index: {}]
  %s10 = inlined_call_operand.vmem [shape: bf16[2,32,32], index: 10, kind: input, shape index: {}]
  %s11 = inlined_call_operand.vmem [shape: f32[2,64,32], index: 11, kind: output, shape index: {}]
  %s12 = sld [smem:[#allocation0]]
  $region81: #{tpu_custom_call.1} parent=0
    _
  %s14 = ssub.s32 1, %s12
  %s15 = scalar_select 0, %s14, %s12
  loop: start=0, step=1, limit=6
  $region2: #{tpu_custom_call.1} parent=0 // loop_pre_header
    _
  $region3: #{tpu_custom_call.1} parent=0 // loop_header
    %s17 = sphi 0, %s21
    %p18 = scmp.ge.s32.totalorder %s17, 6
    %s24 = sphi 0, %s36
    %s25 = sphi 0, %s32
    %s26 = sphi 0, %s24
    %s27 = sphi 0, %s25
    %s28 = sphi 0, %s26
    %s29 = sphi 0, %s27
    %s39 = sphi 0, %s41
    %s42 = sphi 0, %s39
    %s43 = sphi 0, %s42
    %s59 = sphi 0, %s43
    %s63 = sphi 0, %s63
    %s65 = sphi 0, %s63
    %s66 = sphi 0, %s65
    %s80 = sphi 0, %s66
    %s84 = sphi 0, %s84
    %s86 = sphi 0, %s84
    %s87 = sphi 0, %s86
    %s101 = sphi 0, %s87
    %s105 = sphi 0, %s105
    %s107 = sphi 0, %s105
    %s108 = sphi 0, %s107
    %s122 = sphi 0, %s108
    %s126 = sphi 0, %s126
    %s128 = sphi 0, %s126
    %s129 = sphi 0, %s128
    %s143 = sphi 0, %s129
    %s147 = sphi 0, %s147
    %s149 = sphi 0, %s147
    %s150 = sphi 0, %s149
    %s164 = sphi 0, %s150
    %s170 = sphi 0, %s172
    %s173 = sphi 0, %s170
    %s174 = sphi 0, %s173
    %s190 = sphi 0, %s174
    %s196 = sphi 0, %s198
    %s199 = sphi 0, %s196
    %s200 = sphi 0, %s199
    %s216 = sphi 0, %s200
    %s222 = sphi 0, %s224
    %s225 = sphi 0, %s222
    %s226 = sphi 0, %s225
    %s242 = sphi 0, %s226
    %s248 = sphi 0, %s250
    %s251 = sphi 0, %s248
    %s252 = sphi 0, %s251
    %s268 = sphi 0, %s252
    %s274 = sphi 0, %s276
    %s277 = sphi 0, %s274
    %s278 = sphi 0, %s277
    %s294 = sphi 0, %s278
    %s300 = sphi 0, %s302
    %s303 = sphi 0, %s300
    %s304 = sphi 0, %s303
    %s320 = sphi 0, %s304
  $region4: #{tpu_custom_call.1} parent=0 // loop_header_branch
    %20 = sbr.rel (%p18) target = $region8
  $region5: #{tpu_custom_call.1} parent=0 // loop_body
    %s22 = ssub.s32 %s17, 1
    %s23 = ssub.s32 %s17, 2
    %s30 = sadd.s32 1, %s25
    %p31 = scmp.ge.s32.totalorder %s30, 2
    %s32 = scalar_select %p31, 0, %s30
    %s33 = sadd.s32 1, %s24
    %s34 = scalar_select %p31, %s33, %s24
    %p35 = scmp.ge.s32.totalorder %s34, 2
    %s36 = scalar_select %p35, 0, %s34
    %s37 = ssub.s32 %s24, %s36
    %p38 = scmp.eq.s32.totalorder %s37, 0
    %s40 = sadd.s32 %s39, 1
    %s41 = scalar_select %p38, %s39, %s40
    %p44 = pneg %p38
    %p45 = scmp.eq.s32.totalorder %s17, 3
    %p46 = por %p44, %p45
    %p47 = scmp.ne.s32.totalorder %s39, %s42
    %p48 = scmp.eq.s32.totalorder %s17, 0
    %p49 = por %p47, %p48
    %p50 = scmp.ne.s32.totalorder %s39, %s42
    %p51 = scmp.eq.s32.totalorder %s22, 3
    %p52 = por %p50, %p51
    %p53 = scmp.ne.s32.totalorder %s42, %s43
    %p54 = scmp.eq.s32.totalorder %s22, 0
    %p55 = por %p53, %p54
    %p56 = scmp.ne.s32.totalorder %s42, %s43
    %p57 = scmp.eq.s32.totalorder %s23, 3
    %p58 = por %p56, %p57
    %p60 = scmp.ne.s32.totalorder %s43, %s59
    %p61 = scmp.eq.s32.totalorder %s23, 0
    %p62 = por %p60, %p61
    %s64 = sadd.s32 %s63, 1
    %p67 = scmp.eq.s32.totalorder %s17, 3
    %p68 = scmp.ne.s32.totalorder %s63, %s65
    %p69 = scmp.eq.s32.totalorder %s17, 0
    %p70 = por %p68, %p69
    %p71 = scmp.ne.s32.totalorder %s63, %s65
    %p72 = scmp.eq.s32.totalorder %s22, 3
    %p73 = por %p71, %p72
    %p74 = scmp.ne.s32.totalorder %s65, %s66
    %p75 = scmp.eq.s32.totalorder %s22, 0
    %p76 = por %p74, %p75
    %p77 = scmp.ne.s32.totalorder %s65, %s66
    %p78 = scmp.eq.s32.totalorder %s23, 3
    %p79 = por %p77, %p78
    %p81 = scmp.ne.s32.totalorder %s66, %s80
    %p82 = scmp.eq.s32.totalorder %s23, 0
    %p83 = por %p81, %p82
    %s85 = sadd.s32 %s84, 1
    %p88 = scmp.eq.s32.totalorder %s17, 3
    %p89 = scmp.ne.s32.totalorder %s84, %s86
    %p90 = scmp.eq.s32.totalorder %s17, 0
    %p91 = por %p89, %p90
    %p92 = scmp.ne.s32.totalorder %s84, %s86
    %p93 = scmp.eq.s32.totalorder %s22, 3
    %p94 = por %p92, %p93
    %p95 = scmp.ne.s32.totalorder %s86, %s87
    %p96 = scmp.eq.s32.totalorder %s22, 0
    %p97 = por %p95, %p96
    %p98 = scmp.ne.s32.totalorder %s86, %s87
    %p99 = scmp.eq.s32.totalorder %s23, 3
    %p100 = por %p98, %p99
    %p102 = scmp.ne.s32.totalorder %s87, %s101
    %p103 = scmp.eq.s32.totalorder %s23, 0
    %p104 = por %p102, %p103
    %s106 = sadd.s32 %s105, 1
    %p109 = scmp.eq.s32.totalorder %s17, 3
    %p110 = scmp.ne.s32.totalorder %s105, %s107
    %p111 = scmp.eq.s32.totalorder %s17, 0
    %p112 = por %p110, %p111
    %p113 = scmp.ne.s32.totalorder %s105, %s107
    %p114 = scmp.eq.s32.totalorder %s22, 3
    %p115 = por %p113, %p114
    %p116 = scmp.ne.s32.totalorder %s107, %s108
    %p117 = scmp.eq.s32.totalorder %s22, 0
    %p118 = por %p116, %p117
    %p119 = scmp.ne.s32.totalorder %s107, %s108
    %p120 = scmp.eq.s32.totalorder %s23, 3
    %p121 = por %p119, %p120
    %p123 = scmp.ne.s32.totalorder %s108, %s122
    %p124 = scmp.eq.s32.totalorder %s23, 0
    %p125 = por %p123, %p124
    %s127 = sadd.s32 %s126, 1
    %p130 = scmp.eq.s32.totalorder %s17, 3
    %p131 = scmp.ne.s32.totalorder %s126, %s128
    %p132 = scmp.eq.s32.totalorder %s17, 0
    %p133 = por %p131, %p132
    %p134 = scmp.ne.s32.totalorder %s126, %s128
    %p135 = scmp.eq.s32.totalorder %s22, 3
    %p136 = por %p134, %p135
    %p137 = scmp.ne.s32.totalorder %s128, %s129
    %p138 = scmp.eq.s32.totalorder %s22, 0
    %p139 = por %p137, %p138
    %p140 = scmp.ne.s32.totalorder %s128, %s129
    %p141 = scmp.eq.s32.totalorder %s23, 3
    %p142 = por %p140, %p141
    %p144 = scmp.ne.s32.totalorder %s129, %s143
    %p145 = scmp.eq.s32.totalorder %s23, 0
    %p146 = por %p144, %p145
    %s148 = sadd.s32 %s147, 1
    %p151 = scmp.eq.s32.totalorder %s17, 3
    %p152 = scmp.ne.s32.totalorder %s147, %s149
    %p153 = scmp.eq.s32.totalorder %s17, 0
    %p154 = por %p152, %p153
    %p155 = scmp.ne.s32.totalorder %s147, %s149
    %p156 = scmp.eq.s32.totalorder %s22, 3
    %p157 = por %p155, %p156
    %p158 = scmp.ne.s32.totalorder %s149, %s150
    %p159 = scmp.eq.s32.totalorder %s22, 0
    %p160 = por %p158, %p159
    %p161 = scmp.ne.s32.totalorder %s149, %s150
    %p162 = scmp.eq.s32.totalorder %s23, 3
    %p163 = por %p161, %p162
    %p165 = scmp.ne.s32.totalorder %s150, %s164
    %p166 = scmp.eq.s32.totalorder %s23, 0
    %p167 = por %p165, %p166
    %s168 = ssub.s32 %s25, %s32
    %p169 = scmp.eq.s32.totalorder %s168, 0
    %s171 = sadd.s32 %s170, 1
    %s172 = scalar_select %p169, %s170, %s171
    %p175 = pneg %p169
    %p176 = scmp.eq.s32.totalorder %s17, 3
    %p177 = por %p175, %p176
    %p178 = scmp.ne.s32.totalorder %s170, %s173
    %p179 = scmp.eq.s32.totalorder %s17, 0
    %p180 = por %p178, %p179
    %p181 = scmp.ne.s32.totalorder %s170, %s173
    %p182 = scmp.eq.s32.totalorder %s22, 3
    %p183 = por %p181, %p182
    %p184 = scmp.ne.s32.totalorder %s173, %s174
    %p185 = scmp.eq.s32.totalorder %s22, 0
    %p186 = por %p184, %p185
    %p187 = scmp.ne.s32.totalorder %s173, %s174
    %p188 = scmp.eq.s32.totalorder %s23, 3
    %p189 = por %p187, %p188
    %p191 = scmp.ne.s32.totalorder %s174, %s190
    %p192 = scmp.eq.s32.totalorder %s23, 0
    %p193 = por %p191, %p192
    %s194 = ssub.s32 %s25, %s32
    %p195 = scmp.eq.s32.totalorder %s194, 0
    %s197 = sadd.s32 %s196, 1
    %s198 = scalar_select %p195, %s196, %s197
    %p201 = pneg %p195
    %p202 = scmp.eq.s32.totalorder %s17, 3
    %p203 = por %p201, %p202
    %p204 = scmp.ne.s32.totalorder %s196, %s199
    %p205 = scmp.eq.s32.totalorder %s17, 0
    %p206 = por %p204, %p205
    %p207 = scmp.ne.s32.totalorder %s196, %s199
    %p208 = scmp.eq.s32.totalorder %s22, 3
    %p209 = por %p207, %p208
    %p210 = scmp.ne.s32.totalorder %s199, %s200
    %p211 = scmp.eq.s32.totalorder %s22, 0
    %p212 = por %p210, %p211
    %p213 = scmp.ne.s32.totalorder %s199, %s200
    %p214 = scmp.eq.s32.totalorder %s23, 3
    %p215 = por %p213, %p214
    %p217 = scmp.ne.s32.totalorder %s200, %s216
    %p218 = scmp.eq.s32.totalorder %s23, 0
    %p219 = por %p217, %p218
    %s220 = ssub.s32 %s25, %s32
    %p221 = scmp.eq.s32.totalorder %s220, 0
    %s223 = sadd.s32 %s222, 1
    %s224 = scalar_select %p221, %s222, %s223
    %p227 = pneg %p221
    %p228 = scmp.eq.s32.totalorder %s17, 3
    %p229 = por %p227, %p228
    %p230 = scmp.ne.s32.totalorder %s222, %s225
    %p231 = scmp.eq.s32.totalorder %s17, 0
    %p232 = por %p230, %p231
    %p233 = scmp.ne.s32.totalorder %s222, %s225
    %p234 = scmp.eq.s32.totalorder %s22, 3
    %p235 = por %p233, %p234
    %p236 = scmp.ne.s32.totalorder %s225, %s226
    %p237 = scmp.eq.s32.totalorder %s22, 0
    %p238 = por %p236, %p237
    %p239 = scmp.ne.s32.totalorder %s225, %s226
    %p240 = scmp.eq.s32.totalorder %s23, 3
    %p241 = por %p239, %p240
    %p243 = scmp.ne.s32.totalorder %s226, %s242
    %p244 = scmp.eq.s32.totalorder %s23, 0
    %p245 = por %p243, %p244
    %s246 = ssub.s32 %s25, %s32
    %p247 = scmp.eq.s32.totalorder %s246, 0
    %s249 = sadd.s32 %s248, 1
    %s250 = scalar_select %p247, %s248, %s249
    %p253 = pneg %p247
    %p254 = scmp.eq.s32.totalorder %s17, 3
    %p255 = por %p253, %p254
    %p256 = scmp.ne.s32.totalorder %s248, %s251
    %p257 = scmp.eq.s32.totalorder %s17, 0
    %p258 = por %p256, %p257
    %p259 = scmp.ne.s32.totalorder %s248, %s251
    %p260 = scmp.eq.s32.totalorder %s22, 3
    %p261 = por %p259, %p260
    %p262 = scmp.ne.s32.totalorder %s251, %s252
    %p263 = scmp.eq.s32.totalorder %s22, 0
    %p264 = por %p262, %p263
    %p265 = scmp.ne.s32.totalorder %s251, %s252
    %p266 = scmp.eq.s32.totalorder %s23, 3
    %p267 = por %p265, %p266
    %p269 = scmp.ne.s32.totalorder %s252, %s268
    %p270 = scmp.eq.s32.totalorder %s23, 0
    %p271 = por %p269, %p270
    %s272 = ssub.s32 %s25, %s32
    %p273 = scmp.eq.s32.totalorder %s272, 0
    %s275 = sadd.s32 %s274, 1
    %s276 = scalar_select %p273, %s274, %s275
    %p279 = pneg %p273
    %p280 = scmp.eq.s32.totalorder %s17, 3
    %p281 = por %p279, %p280
    %p282 = scmp.ne.s32.totalorder %s274, %s277
    %p283 = scmp.eq.s32.totalorder %s17, 0
    %p284 = por %p282, %p283
    %p285 = scmp.ne.s32.totalorder %s274, %s277
    %p286 = scmp.eq.s32.totalorder %s22, 3
    %p287 = por %p285, %p286
    %p288 = scmp.ne.s32.totalorder %s277, %s278
    %p289 = scmp.eq.s32.totalorder %s22, 0
    %p290 = por %p288, %p289
    %p291 = scmp.ne.s32.totalorder %s277, %s278
    %p292 = scmp.eq.s32.totalorder %s23, 3
    %p293 = por %p291, %p292
    %p295 = scmp.ne.s32.totalorder %s278, %s294
    %p296 = scmp.eq.s32.totalorder %s23, 0
    %p297 = por %p295, %p296
    %s298 = ssub.s32 %s24, %s36
    %p299 = scmp.eq.s32.totalorder %s298, 0
    %s301 = sadd.s32 %s300, 1
    %s302 = scalar_select %p299, %s300, %s301
    %p305 = pneg %p299
    %p306 = scmp.eq.s32.totalorder %s17, 3
    %p307 = por %p305, %p306
    %p308 = scmp.ne.s32.totalorder %s300, %s303
    %p309 = scmp.eq.s32.totalorder %s17, 0
    %p310 = por %p308, %p309
    %p311 = scmp.ne.s32.totalorder %s300, %s303
    %p312 = scmp.eq.s32.totalorder %s22, 3
    %p313 = por %p311, %p312
    %p314 = scmp.ne.s32.totalorder %s303, %s304
    %p315 = scmp.eq.s32.totalorder %s22, 0
    %p316 = por %p314, %p315
    %p317 = scmp.ne.s32.totalorder %s303, %s304
    %p318 = scmp.eq.s32.totalorder %s23, 3
    %p319 = por %p317, %p318
    %p321 = scmp.ne.s32.totalorder %s304, %s320
    %p322 = scmp.eq.s32.totalorder %s23, 0
    %p323 = por %p321, %p322
    %p324 = scmp.le.s32.totalorder 1, %s17
    %p325 = scmp.lt.s32.totalorder %s17, 5
    %p326 = pnand %p324, %p325
    %p327 = pneg %p326
    // Predicated region
    $region9: #{tpu_custom_call.1} parent=5 // pred_check
      _
    $region10: #{tpu_custom_call.1} parent=5 // pred_check_branch
      %329 = sbr.rel (%p326) target = $region12
    $region11: #{tpu_custom_call.1} parent=5 // pred_region
      %s330 = ssub.s32 %s17, 1
      // Predicated region
      $region13: #{tpu_custom_call.1} parent=11 // pred_check
        %p331 = pneg %p76
      $region14: #{tpu_custom_call.1} parent=11 // pred_check_branch
        %333 = sbr.rel (%p331) target = $region16
      $region15: #{tpu_custom_call.1} parent=11 // pred_region
        _
      $region16: #{tpu_custom_call.1} parent=11 // pred_fallthru
        _
      // Predicated region
      $region17: #{tpu_custom_call.1} parent=11 // pred_check
        %p334 = pneg %p97
      $region18: #{tpu_custom_call.1} parent=11 // pred_check_branch
        %336 = sbr.rel (%p334) target = $region20
      $region19: #{tpu_custom_call.1} parent=11 // pred_region
        _
      $region20: #{tpu_custom_call.1} parent=11 // pred_fallthru
        _
      // Predicated region
      $region21: #{tpu_custom_call.1} parent=11 // pred_check
        %p337 = pneg %p118
      $region22: #{tpu_custom_call.1} parent=11 // pred_check_branch
        %339 = sbr.rel (%p337) target = $region24
      $region23: #{tpu_custom_call.1} parent=11 // pred_region
        _
      $region24: #{tpu_custom_call.1} parent=11 // pred_fallthru
        _
      // Predicated region
      $region25: #{tpu_custom_call.1} parent=11 // pred_check
        %p340 = pneg %p139
      $region26: #{tpu_custom_call.1} parent=11 // pred_check_branch
        %342 = sbr.rel (%p340) target = $region28
      $region27: #{tpu_custom_call.1} parent=11 // pred_region
        _
      $region28: #{tpu_custom_call.1} parent=11 // pred_fallthru
        _
      // Predicated region
      $region29: #{tpu_custom_call.1} parent=11 // pred_check
        %p343 = pneg %p160
      $region30: #{tpu_custom_call.1} parent=11 // pred_check_branch
        %345 = sbr.rel (%p343) target = $region32
      $region31: #{tpu_custom_call.1} parent=11 // pred_region
        _
      $region32: #{tpu_custom_call.1} parent=11 // pred_fallthru
        _
    $region12: #{tpu_custom_call.1} parent=5 // pred_fallthru
      _
    %p346 = scmp.lt.s32.totalorder %s17, 4
    // Predicated region
    $region33: #{tpu_custom_call.1} parent=5 // pred_check
      %p347 = pneg %p346
    $region34: #{tpu_custom_call.1} parent=5 // pred_check_branch
      %349 = sbr.rel (%p347) target = $region36
    $region35: #{tpu_custom_call.1} parent=5 // pred_region
      // Predicated region
      $region37: #{tpu_custom_call.1} parent=35 // pred_check
        %p350 = pneg %p49
      $region38: #{tpu_custom_call.1} parent=35 // pred_check_branch
        %352 = sbr.rel (%p350) target = $region40
      $region39: #{tpu_custom_call.1} parent=35 // pred_region
        %p353 = scmp.lt.s32.totalorder %s24, 1
        %s354 = scalar_select %p353, %s24, 1
        %s355 = smul.addr %s354, 8
        %s356 = smul.addr %s355, 8
        %s357 = scalar_lea.vmem %s0, %s356
      $region40: #{tpu_custom_call.1} parent=35 // pred_fallthru
        _
      // Predicated region
      $region41: #{tpu_custom_call.1} parent=35 // pred_check
        %p358 = pneg %p180
      $region42: #{tpu_custom_call.1} parent=35 // pred_check_branch
        %360 = sbr.rel (%p358) target = $region44
      $region43: #{tpu_custom_call.1} parent=35 // pred_region
        %p361 = scmp.lt.s32.totalorder %s25, 1
        %s362 = scalar_select %p361, %s25, 1
        %s363 = smul.addr %s362, 4
        %s364 = smul.addr %s363, 4
        %s365 = scalar_lea.vmem %s6, %s364
      $region44: #{tpu_custom_call.1} parent=35 // pred_fallthru
        _
      // Predicated region
      $region45: #{tpu_custom_call.1} parent=35 // pred_check
        %p366 = pneg %p206
      $region46: #{tpu_custom_call.1} parent=35 // pred_check_branch
        %368 = sbr.rel (%p366) target = $region48
      $region47: #{tpu_custom_call.1} parent=35 // pred_region
        %p369 = scmp.lt.s32.totalorder %s25, 1
        %s370 = scalar_select %p369, %s25, 1
        %s371 = scalar_lea.vmem %s7, %s370
      $region48: #{tpu_custom_call.1} parent=35 // pred_fallthru
        _
      // Predicated region
      $region49: #{tpu_custom_call.1} parent=35 // pred_check
        %p372 = pneg %p232
      $region50: #{tpu_custom_call.1} parent=35 // pred_check_branch
        %374 = sbr.rel (%p372) target = $region52
      $region51: #{tpu_custom_call.1} parent=35 // pred_region
        %p375 = scmp.lt.s32.totalorder %s25, 1
        %s376 = scalar_select %p375, %s25, 1
        %s377 = smul.addr %s376, 4
        %s378 = smul.addr %s377, 4
        %s379 = scalar_lea.vmem %s8, %s378
      $region52: #{tpu_custom_call.1} parent=35 // pred_fallthru
        _
      // Predicated region
      $region53: #{tpu_custom_call.1} parent=35 // pred_check
        %p380 = pneg %p258
      $region54: #{tpu_custom_call.1} parent=35 // pred_check_branch
        %382 = sbr.rel (%p380) target = $region56
      $region55: #{tpu_custom_call.1} parent=35 // pred_region
        %p383 = scmp.lt.s32.totalorder %s25, 1
        %s384 = scalar_select %p383, %s25, 1
        %s385 = scalar_lea.vmem %s9, %s384
      $region56: #{tpu_custom_call.1} parent=35 // pred_fallthru
        _
      // Predicated region
      $region57: #{tpu_custom_call.1} parent=35 // pred_check
        %p386 = pneg %p284
      $region58: #{tpu_custom_call.1} parent=35 // pred_check_branch
        %388 = sbr.rel (%p386) target = $region60
      $region59: #{tpu_custom_call.1} parent=35 // pred_region
        %p389 = scmp.lt.s32.totalorder %s25, 1
        %s390 = scalar_select %p389, %s25, 1
        %s391 = smul.addr %s390, 4
        %s392 = smul.addr %s391, 4
        %s393 = scalar_lea.vmem %s10, %s392
      $region60: #{tpu_custom_call.1} parent=35 // pred_fallthru
        _
    $region36: #{tpu_custom_call.1} parent=5 // pred_fallthru
      _
    %p394 = scmp.le.s32.totalorder 1, %s17
    %p395 = scmp.lt.s32.totalorder %s17, 5
    %p396 = pnand %p394, %p395
    %p397 = pneg %p396
    // Predicated region
    $region61: #{tpu_custom_call.1} parent=5 // pred_check
      _
    $region62: #{tpu_custom_call.1} parent=5 // pred_check_branch
      %399 = sbr.rel (%p396) target = $region64
    $region63: #{tpu_custom_call.1} parent=5 // pred_region
      %s400 = ssub.s32 %s17, 1
      %p401 = scmp.lt.s32.totalorder %s26, 1
      %s402 = scalar_select %p401, %s26, 1
      %s403 = smul.addr %s402, 8
      %s404 = smul.addr %s403, 8
      %s405 = scalar_lea.vmem %s0, %s404
      %p406 = pneg %p55
      %p407 = pneg %p52
      %p408 = pneg %p76
      %p409 = pneg %p73
      %p410 = pneg %p97
      %p411 = pneg %p94
      %p412 = pneg %p118
      %p413 = pneg %p115
      %p414 = pneg %p139
      %p415 = pneg %p136
      %p416 = pneg %p160
      %p417 = pneg %p157
      %p418 = scmp.lt.s32.totalorder %s27, 1
      %s419 = scalar_select %p418, %s27, 1
      %s420 = smul.addr %s419, 4
      %s421 = smul.addr %s420, 4
      %s422 = scalar_lea.vmem %s6, %s421
      %p423 = pneg %p186
      %p424 = pneg %p183
      %p425 = scmp.lt.s32.totalorder %s27, 1
      %s426 = scalar_select %p425, %s27, 1
      %s427 = scalar_lea.vmem %s7, %s426
      %p428 = pneg %p212
      %p429 = pneg %p209
      %p430 = scmp.lt.s32.totalorder %s27, 1
      %s431 = scalar_select %p430, %s27, 1
      %s432 = smul.addr %s431, 4
      %s433 = smul.addr %s432, 4
      %s434 = scalar_lea.vmem %s8, %s433
      %p435 = pneg %p238
      %p436 = pneg %p235
      %p437 = scmp.lt.s32.totalorder %s27, 1
      %s438 = scalar_select %p437, %s27, 1
      %s439 = scalar_lea.vmem %s9, %s438
      %p440 = pneg %p264
      %p441 = pneg %p261
      %p442 = scmp.lt.s32.totalorder %s27, 1
      %s443 = scalar_select %p442, %s27, 1
      %s444 = smul.addr %s443, 4
      %s445 = smul.addr %s444, 4
      %s446 = scalar_lea.vmem %s10, %s445
      %p447 = pneg %p290
      %p448 = pneg %p287
      %p449 = pneg %p316
      %p450 = pneg %p313
      %p451 = scmp.lt.s32.totalorder %s26, 1
      %s452 = scalar_select %p451, %s26, 1
      %s453 = smul.addr %s452, 8
      %s454 = smul.addr %s453, 8
      %s455 = scalar_lea.vmem %s11, %s454
      %p456 = scmp.lt.s32.totalorder %s26, 1
      %s457 = scalar_select %p456, %s26, 1
      %s458 = smul.addr %s457, 8
      %s459 = smul.addr %s458, 8
      %s460 = scalar_lea.vmem %s0, %s459
      %p461 = scmp.lt.s32.totalorder %s27, 1
      %s462 = scalar_select %p461, %s27, 1
      %s463 = smul.addr %s462, 4
      %s464 = smul.addr %s463, 4
      %s465 = scalar_lea.vmem %s6, %s464
      %p466 = scmp.lt.s32.totalorder %s27, 1
      %s467 = scalar_select %p466, %s27, 1
      %s468 = scalar_lea.vmem %s7, %s467
      %p469 = scmp.lt.s32.totalorder %s27, 1
      %s470 = scalar_select %p469, %s27, 1
      %s471 = smul.addr %s470, 4
      %s472 = smul.addr %s471, 4
      %s473 = scalar_lea.vmem %s8, %s472
      %p474 = scmp.lt.s32.totalorder %s27, 1
      %s475 = scalar_select %p474, %s27, 1
      %s476 = scalar_lea.vmem %s9, %s475
      %p477 = scmp.lt.s32.totalorder %s27, 1
      %s478 = scalar_select %p477, %s27, 1
      %s479 = smul.addr %s478, 4
      %s480 = smul.addr %s479, 4
      %s481 = scalar_lea.vmem %s10, %s480
      %p482 = scmp.lt.s32.totalorder %s26, 1
      %s483 = scalar_select %p482, %s26, 1
      %s484 = smul.addr %s483, 8
      %s485 = smul.addr %s484, 8
      %s486 = scalar_lea.vmem %s11, %s485
      %p488 = scmp.eq.s32.totalorder %s27, 0
      // Predicated region
      $region65: #{tpu_custom_call.1} parent=63 // pred_check
        %p489 = pneg %p488
      $region66: #{tpu_custom_call.1} parent=63 // pred_check_branch
        %491 = sbr.rel (%p489) target = $region68
      $region67: #{tpu_custom_call.1} parent=63 // pred_region
        %v492 = vld [vmem:[%s460] sm:$0xff]
        %v493 = vld [vmem:[%s460 + $0x8] sm:$0xff]
        %v494 = vld [vmem:[%s460 + $0x10] sm:$0xff]
        %v495 = vld [vmem:[%s460 + $0x18] sm:$0xff]
        %v496 = vld [vmem:[%s460 + $0x20] sm:$0xff]
        %v497 = vld [vmem:[%s460 + $0x28] sm:$0xff]
        %v498 = vld [vmem:[%s460 + $0x30] sm:$0xff]
        %v499 = vld [vmem:[%s460 + $0x38] sm:$0xff]
        %v500 = vpack.c.bf16 %v493, %v492
        %v501 = vpack.c.bf16 %v495, %v494
        %v502 = vpack.c.bf16 %v497, %v496
        %v503 = vpack.c.bf16 %v499, %v498
        %v504 = vld [vmem:[%s1] sm:$0xf]
        %v505 = vld [vmem:[%s1 + $0x4] sm:$0xf]
        %v508 = vunpack.c.l.b16 %v504
        %v509 = vunpack.c.l.b16 %v505
        %v510 = vpack.c.b16 %v509, %v508
        %vm512 = vcmask 130048
        %v514 = vsel %vm512, %v500, 0
        %v517 = vsel %vm512, %v501, 0
        %v520 = vsel %vm512, %v502, 0
        %v523 = vsel %vm512, %v503, 0
        %525 = vmatprep.subr.bf16.mxu0 0
        %526 = vmatpush1.bf16.msra.mxu0 %v510
        %527 = vmatprep.subr.bf16.mxu0 0
        %528 = vmatpush1.bf16.msra.mxu0 0
        %529 = vmatprep.subr.bf16.mxu0 0
        %530 = vmatpush1.bf16.msra.mxu0 0
        %531 = vmatprep.subr.bf16.mxu0 0
        %532 = vmatpush1.bf16.msra.mxu0 0
        %533 = vmatprep.subr.bf16.mxu0 0
        %534 = vmatpush1.bf16.msra.mxu0 0
        %535 = vmatprep.subr.bf16.mxu0 0
        %536 = vmatpush1.bf16.msra.mxu0 0
        %537 = vmatprep.subr.bf16.mxu0 0
        %538 = vmatpush1.bf16.msra.mxu0 0
        %539 = vmatprep.subr.bf16.mxu0 0
        %540 = vmatpush1.bf16.msra.mxu0 0
        %541 = vmatprep.subr.bf16.mxu0 0
        %542 = vmatpush1.bf16.msra.mxu0 0
        %543 = vmatprep.subr.bf16.mxu0 0
        %544 = vmatpush1.bf16.msra.mxu0 0
        %545 = vmatprep.subr.bf16.mxu0 0
        %546 = vmatpush1.bf16.msra.mxu0 0
        %547 = vmatprep.subr.bf16.mxu0 0
        %548 = vmatpush1.bf16.msra.mxu0 0
        %549 = vmatprep.subr.bf16.mxu0 0
        %550 = vmatpush1.bf16.msra.mxu0 0
        %551 = vmatprep.subr.bf16.mxu0 0
        %552 = vmatpush1.bf16.msra.mxu0 0
        %553 = vmatprep.subr.bf16.mxu0 0
        %554 = vmatpush1.bf16.msra.mxu0 0
        %555 = vmatprep.subr.bf16.mxu0 0
        %556 = vmatpush1.bf16.msra.mxu0 0
        %557 = vmatprep.mubr.bf16.mxu0 0
        %558 = vmatmul.mubr.bf16.gmra.mrb[0].mxu0 %v514
        %v559 = vpop.f32.mrb[0].mxu0
        %v560 = vadd.f32 0.0, %v559
        %v561 = vpop.f32.mrb[0].mxu0
        %v562 = vpop.f32.mrb[0].mxu0
        %v563 = vadd.f32 0.0, %v562
        %v564 = vpop.f32.mrb[0].mxu0
        %565 = vmatprep.mubr.bf16.mxu0 0
        %566 = vmatmul.mubr.bf16.gmra.mrb[0].mxu0 %v517
        %v567 = vpop.f32.mrb[0].mxu0
        %v568 = vadd.f32 0.0, %v567
        %v569 = vpop.f32.mrb[0].mxu0
        %v570 = vpop.f32.mrb[0].mxu0
        %v571 = vadd.f32 0.0, %v570
        %v572 = vpop.f32.mrb[0].mxu0
        %573 = vmatprep.mubr.bf16.mxu0 0
        %574 = vmatmul.mubr.bf16.gmra.mrb[0].mxu0 %v520
        %v575 = vpop.f32.mrb[0].mxu0
        %v576 = vadd.f32 0.0, %v575
        %v577 = vpop.f32.mrb[0].mxu0
        %v578 = vpop.f32.mrb[0].mxu0
        %v579 = vadd.f32 0.0, %v578
        %v580 = vpop.f32.mrb[0].mxu0
        %581 = vmatprep.mubr.bf16.mxu0 0
        %582 = vmatmul.mubr.bf16.gmra.mrb[0].mxu0 %v523
        %v583 = vpop.f32.mrb[0].mxu0
        %v584 = vadd.f32 0.0, %v583
        %v585 = vpop.f32.mrb[0].mxu0
        %v586 = vpop.f32.mrb[0].mxu0
        %v587 = vadd.f32 0.0, %v586
        %v588 = vpop.f32.mrb[0].mxu0
        %589 = vdwg.mxu0
        %v590 = vld [vmem:[%s2] sm:$0x1]
        %v592 = vlaneseq
        %v593 = vshrl.u32 %v592, 7
        %v594 = vsub.s32 0, %v593
        %v595 = vrot.slane %v590, %v594
        %v597 = vmul.f32 %v560, %v595
        %v598 = vmul.f32 %v563, %v595
        %v599 = vmul.f32 %v568, %v595
        %v600 = vmul.f32 %v571, %v595
        %v601 = vmul.f32 %v576, %v595
        %v602 = vmul.f32 %v579, %v595
        %v603 = vmul.f32 %v584, %v595
        %v604 = vmul.f32 %v587, %v595
        %v605 = vld [vmem:[%s3] sm:$0x1]
        %v607 = vlaneseq
        %v608 = vshrl.u32 %v607, 7
        %v609 = vsub.s32 0, %v608
        %v610 = vrot.slane %v605, %v609
        %v612 = vadd.f32 %v597, %v610
        %v613 = vadd.f32 %v598, %v610
        %v614 = vadd.f32 %v599, %v610
        %v615 = vadd.f32 %v600, %v610
        %v616 = vadd.f32 %v601, %v610
        %v617 = vadd.f32 %v602, %v610
        %v618 = vadd.f32 %v603, %v610
        %v619 = vadd.f32 %v604, %v610
        %v620 = vxor.u32 %v612, 2147483648
        %v621 = vxor.u32 %v613, 2147483648
        %v622 = vxor.u32 %v614, 2147483648
        %v623 = vxor.u32 %v615, 2147483648
        %v624 = vxor.u32 %v616, 2147483648
        %v625 = vxor.u32 %v617, 2147483648
        %v626 = vxor.u32 %v618, 2147483648
        %v627 = vxor.u32 %v619, 2147483648
        %v628 = vmul.f32 %v620, 1.442695
        %v629 = vpow.pop %v628
        %v630 = vmul.f32 %v621, 1.442695
        %v631 = vpow.pop %v630
        %v632 = vmul.f32 %v622, 1.442695
        %v633 = vpow.pop %v632
        %v634 = vmul.f32 %v623, 1.442695
        %v635 = vpow.pop %v634
        %v636 = vmul.f32 %v624, 1.442695
        %v637 = vpow.pop %v636
        %v638 = vmul.f32 %v625, 1.442695
        %v639 = vpow.pop %v638
        %v640 = vmul.f32 %v626, 1.442695
        %v641 = vpow.pop %v640
        %v642 = vmul.f32 %v627, 1.442695
        %v643 = vpow.pop %v642
        %v644 = vadd.f32 %v629, 1.0
        %v645 = vadd.f32 %v631, 1.0
        %v646 = vadd.f32 %v633, 1.0
        %v647 = vadd.f32 %v635, 1.0
        %v648 = vadd.f32 %v637, 1.0
        %v649 = vadd.f32 %v639, 1.0
        %v650 = vadd.f32 %v641, 1.0
        %v651 = vadd.f32 %v643, 1.0
        %v652 = vrcp.pop %v644
        %v653 = vmul.f32 1.0, %v652
        %v654 = vrcp.pop %v645
        %v655 = vmul.f32 1.0, %v654
        %v656 = vrcp.pop %v646
        %v657 = vmul.f32 1.0, %v656
        %v658 = vrcp.pop %v647
        %v659 = vmul.f32 1.0, %v658
        %v660 = vrcp.pop %v648
        %v661 = vmul.f32 1.0, %v660
        %v662 = vrcp.pop %v649
        %v663 = vmul.f32 1.0, %v662
        %v664 = vrcp.pop %v650
        %v665 = vmul.f32 1.0, %v664
        %v666 = vrcp.pop %v651
        %v667 = vmul.f32 1.0, %v666
        %v668 = vmul.f32 %v612, %v653
        %v669 = vmul.f32 %v613, %v655
        %v670 = vmul.f32 %v614, %v657
        %v671 = vmul.f32 %v615, %v659
        %v672 = vmul.f32 %v616, %v661
        %v673 = vmul.f32 %v617, %v663
        %v674 = vmul.f32 %v618, %v665
        %v675 = vmul.f32 %v619, %v667
        %v676 = vpack.c.bf16 %v669, %v668
        %v677 = vpack.c.bf16 %v671, %v670
        %v678 = vpack.c.bf16 %v673, %v672
        %v679 = vpack.c.bf16 %v675, %v674
        %v680 = vld [vmem:[%s4] sm:$0xf]
        %v681 = vld [vmem:[%s4 + $0x4] sm:$0xf]
        %v682 = vld [vmem:[%s4 + $0x8] sm:$0xf]
        %v683 = vld [vmem:[%s4 + $0xc] sm:$0xf]
        %v684 = vld [vmem:[%s5] sm:$0x1]
        %v686 = vlaneseq
        %v687 = vshrl.u32 %v686, 7
        %v688 = vsub.s32 0, %v687
        %v689 = vrot.slane %v684, %v688
        %v695 = vunpack.c.l.b16 %v680
        %v696 = vunpack.c.l.b16 %v681
        %v697 = vunpack.c.l.b16 %v682
        %v698 = vunpack.c.l.b16 %v683
        %v699 = vpack.c.b16 %v696, %v695
        %v700 = vpack.c.b16 %v698, %v697
        %vm703 = vcmask 261120
        %v705 = vsel %vm703, %v676, 0
        %v708 = vsel %vm703, %v677, 0
        %v711 = vsel %vm703, %v678, 0
        %v714 = vsel %vm703, %v679, 0
        %716 = vmatprep.subr.bf16.mxu0 0
        %717 = vmatpush1.bf16.msra.mxu0 %v699
        %718 = vmatprep.subr.bf16.mxu0 0
        %719 = vmatpush1.bf16.msra.mxu0 %v700
        %720 = vmatprep.subr.bf16.mxu0 0
        %721 = vmatpush1.bf16.msra.mxu0 0
        %722 = vmatprep.subr.bf16.mxu0 0
        %723 = vmatpush1.bf16.msra.mxu0 0
        %724 = vmatprep.subr.bf16.mxu0 0
        %725 = vmatpush1.bf16.msra.mxu0 0
        %726 = vmatprep.subr.bf16.mxu0 0
        %727 = vmatpush1.bf16.msra.mxu0 0
        %728 = vmatprep.subr.bf16.mxu0 0
        %729 = vmatpush1.bf16.msra.mxu0 0
        %730 = vmatprep.subr.bf16.mxu0 0
        %731 = vmatpush1.bf16.msra.mxu0 0
        %732 = vmatprep.subr.bf16.mxu0 0
        %733 = vmatpush1.bf16.msra.mxu0 0
        %734 = vmatprep.subr.bf16.mxu0 0
        %735 = vmatpush1.bf16.msra.mxu0 0
        %736 = vmatprep.subr.bf16.mxu0 0
        %737 = vmatpush1.bf16.msra.mxu0 0
        %738 = vmatprep.subr.bf16.mxu0 0
        %739 = vmatpush1.bf16.msra.mxu0 0
        %740 = vmatprep.subr.bf16.mxu0 0
        %741 = vmatpush1.bf16.msra.mxu0 0
        %742 = vmatprep.subr.bf16.mxu0 0
        %743 = vmatpush1.bf16.msra.mxu0 0
        %744 = vmatprep.subr.bf16.mxu0 0
        %745 = vmatpush1.bf16.msra.mxu0 0
        %746 = vmatprep.subr.bf16.mxu0 0
        %747 = vmatpush1.bf16.msra.mxu0 0
        %748 = vmatprep.mubr.bf16.mxu0 0
        %749 = vmatmul.mubr.bf16.gmra.mrb[0].mxu0 %v705
        %v750 = vpop.f32.mrb[0].mxu0
        %v751 = vadd.f32 %v689, %v750
        %v752 = vpop.f32.mrb[0].mxu0
        %v753 = vpop.f32.mrb[0].mxu0
        %v754 = vadd.f32 %v689, %v753
        %v755 = vpop.f32.mrb[0].mxu0
        %756 = vmatprep.mubr.bf16.mxu0 0
        %757 = vmatmul.mubr.bf16.gmra.mrb[0].mxu0 %v708
        %v758 = vpop.f32.mrb[0].mxu0
        %v759 = vadd.f32 %v689, %v758
        %v760 = vpop.f32.mrb[0].mxu0
        %v761 = vpop.f32.mrb[0].mxu0
        %v762 = vadd.f32 %v689, %v761
        %v763 = vpop.f32.mrb[0].mxu0
        %764 = vmatprep.mubr.bf16.mxu0 0
        %765 = vmatmul.mubr.bf16.gmra.mrb[0].mxu0 %v711
        %v766 = vpop.f32.mrb[0].mxu0
        %v767 = vadd.f32 %v689, %v766
        %v768 = vpop.f32.mrb[0].mxu0
        %v769 = vpop.f32.mrb[0].mxu0
        %v770 = vadd.f32 %v689, %v769
        %v771 = vpop.f32.mrb[0].mxu0
        %772 = vmatprep.mubr.bf16.mxu0 0
        %773 = vmatmul.mubr.bf16.gmra.mrb[0].mxu0 %v714
        %v774 = vpop.f32.mrb[0].mxu0
        %v775 = vadd.f32 %v689, %v774
        %v776 = vpop.f32.mrb[0].mxu0
        %v777 = vpop.f32.mrb[0].mxu0
        %v778 = vadd.f32 %v689, %v777
        %v779 = vpop.f32.mrb[0].mxu0
        %780 = vdwg.mxu0
        %v781 = vadd.f32 %v668, %v751
        %v782 = vadd.f32 %v669, %v754
        %v783 = vadd.f32 %v670, %v759
        %v784 = vadd.f32 %v671, %v762
        %v785 = vadd.f32 %v672, %v767
        %v786 = vadd.f32 %v673, %v770
        %v787 = vadd.f32 %v674, %v775
        %v788 = vadd.f32 %v675, %v778
        %789 = vst.msk [vmem:[%s486] sm:$0xff] %vm703, %v781
        %790 = vst.msk [vmem:[%s486 + $0x8] sm:$0xff] %vm703, %v782
        %791 = vst.msk [vmem:[%s486 + $0x10] sm:$0xff] %vm703, %v783
        %792 = vst.msk [vmem:[%s486 + $0x18] sm:$0xff] %vm703, %v784
        %793 = vst.msk [vmem:[%s486 + $0x20] sm:$0xff] %vm703, %v785
        %794 = vst.msk [vmem:[%s486 + $0x28] sm:$0xff] %vm703, %v786
        %795 = vst.msk [vmem:[%s486 + $0x30] sm:$0xff] %vm703, %v787
        %796 = vst.msk [vmem:[%s486 + $0x38] sm:$0xff] %vm703, %v788
      $region68: #{tpu_custom_call.1} parent=63 // pred_fallthru
        _
      %v797 = vld [vmem:[%s486] sm:$0xff]
      %v798 = vld [vmem:[%s486 + $0x8] sm:$0xff]
      %v799 = vld [vmem:[%s486 + $0x10] sm:$0xff]
      %v800 = vld [vmem:[%s486 + $0x18] sm:$0xff]
      %v801 = vld [vmem:[%s486 + $0x20] sm:$0xff]
      %v802 = vld [vmem:[%s486 + $0x28] sm:$0xff]
      %v803 = vld [vmem:[%s486 + $0x30] sm:$0xff]
      %v804 = vld [vmem:[%s486 + $0x38] sm:$0xff]
      %v805 = vpack.c.bf16 %v798, %v797
      %v806 = vpack.c.bf16 %v800, %v799
      %v807 = vpack.c.bf16 %v802, %v801
      %v808 = vpack.c.bf16 %v804, %v803
      %v809 = vld [vmem:[%s465] sm:$0xf]
      %v810 = vld [vmem:[%s465 + $0x4] sm:$0xf]
      %v811 = vld [vmem:[%s465 + $0x8] sm:$0xf]
      %v812 = vld [vmem:[%s465 + $0xc] sm:$0xf]
      %v813 = vld [vmem:[%s468] sm:$0x1]
      %v815 = vlaneseq
      %v816 = vshrl.u32 %v815, 7
      %v817 = vsub.s32 0, %v816
      %v818 = vrot.slane %v813, %v817
      %v824 = vunpack.c.l.b16 %v809
      %v825 = vunpack.c.l.b16 %v810
      %v826 = vunpack.c.l.b16 %v811
      %v827 = vunpack.c.l.b16 %v812
      %v828 = vpack.c.b16 %v825, %v824
      %v829 = vpack.c.b16 %v827, %v826
      %vm832 = vcmask 261120
      %v834 = vsel %vm832, %v805, 0
      %v837 = vsel %vm832, %v806, 0
      %v840 = vsel %vm832, %v807, 0
      %v843 = vsel %vm832, %v808, 0
      %845 = vmatprep.subr.bf16.mxu0 0
      %846 = vmatpush1.bf16.msra.mxu0 %v828
      %847 = vmatprep.subr.bf16.mxu0 0
      %848 = vmatpush1.bf16.msra.mxu0 %v829
      %849 = vmatprep.subr.bf16.mxu0 0
      %850 = vmatpush1.bf16.msra.mxu0 0
      %851 = vmatprep.subr.bf16.mxu0 0
      %852 = vmatpush1.bf16.msra.mxu0 0
      %853 = vmatprep.subr.bf16.mxu0 0
      %854 = vmatpush1.bf16.msra.mxu0 0
      %855 = vmatprep.subr.bf16.mxu0 0
      %856 = vmatpush1.bf16.msra.mxu0 0
      %857 = vmatprep.subr.bf16.mxu0 0
      %858 = vmatpush1.bf16.msra.mxu0 0
      %859 = vmatprep.subr.bf16.mxu0 0
      %860 = vmatpush1.bf16.msra.mxu0 0
      %861 = vmatprep.subr.bf16.mxu0 0
      %862 = vmatpush1.bf16.msra.mxu0 0
      %863 = vmatprep.subr.bf16.mxu0 0
      %864 = vmatpush1.bf16.msra.mxu0 0
      %865 = vmatprep.subr.bf16.mxu0 0
      %866 = vmatpush1.bf16.msra.mxu0 0
      %867 = vmatprep.subr.bf16.mxu0 0
      %868 = vmatpush1.bf16.msra.mxu0 0
      %869 = vmatprep.subr.bf16.mxu0 0
      %870 = vmatpush1.bf16.msra.mxu0 0
      %871 = vmatprep.subr.bf16.mxu0 0
      %872 = vmatpush1.bf16.msra.mxu0 0
      %873 = vmatprep.subr.bf16.mxu0 0
      %874 = vmatpush1.bf16.msra.mxu0 0
      %875 = vmatprep.subr.bf16.mxu0 0
      %876 = vmatpush1.bf16.msra.mxu0 0
      %877 = vmatprep.mubr.bf16.mxu0 0
      %878 = vmatmul.mubr.bf16.gmra.mrb[0].mxu0 %v834
      %v879 = vpop.f32.mrb[0].mxu0
      %v880 = vadd.f32 %v818, %v879
      %v881 = vpop.f32.mrb[0].mxu0
      %v882 = vpop.f32.mrb[0].mxu0
      %v883 = vadd.f32 %v818, %v882
      %v884 = vpop.f32.mrb[0].mxu0
      %885 = vmatprep.mubr.bf16.mxu0 0
      %886 = vmatmul.mubr.bf16.gmra.mrb[0].mxu0 %v837
      %v887 = vpop.f32.mrb[0].mxu0
      %v888 = vadd.f32 %v818, %v887
      %v889 = vpop.f32.mrb[0].mxu0
      %v890 = vpop.f32.mrb[0].mxu0
      %v891 = vadd.f32 %v818, %v890
      %v892 = vpop.f32.mrb[0].mxu0
      %893 = vmatprep.mubr.bf16.mxu0 0
      %894 = vmatmul.mubr.bf16.gmra.mrb[0].mxu0 %v840
      %v895 = vpop.f32.mrb[0].mxu0
      %v896 = vadd.f32 %v818, %v895
      %v897 = vpop.f32.mrb[0].mxu0
      %v898 = vpop.f32.mrb[0].mxu0
      %v899 = vadd.f32 %v818, %v898
      %v900 = vpop.f32.mrb[0].mxu0
      %901 = vmatprep.mubr.bf16.mxu0 0
      %902 = vmatmul.mubr.bf16.gmra.mrb[0].mxu0 %v843
      %v903 = vpop.f32.mrb[0].mxu0
      %v904 = vadd.f32 %v818, %v903
      %v905 = vpop.f32.mrb[0].mxu0
      %v906 = vpop.f32.mrb[0].mxu0
      %v907 = vadd.f32 %v818, %v906
      %v908 = vpop.f32.mrb[0].mxu0
      %909 = vdwg.mxu0
      %v910 = vpack.c.bf16 %v883, %v880
      %v911 = vpack.c.bf16 %v891, %v888
      %v912 = vpack.c.bf16 %v899, %v896
      %v913 = vpack.c.bf16 %v907, %v904
      %918 = vrot.lane.b32.xlu0 %v910, 96
      %v919 = vpop.permute.xlu0 %918
      %920 = vrot.lane.b32.xlu0 %v911, 96
      %v921 = vpop.permute.xlu0 %920
      %922 = vrot.lane.b32.xlu0 %v912, 96
      %v923 = vpop.permute.xlu0 %922
      %924 = vrot.lane.b32.xlu0 %v913, 96
      %v925 = vpop.permute.xlu0 %924
      %vm926 = vcmask 64512
      %v928 = vsel %vm926, %v910, 0
      %v931 = vsel %vm926, %v911, 0
      %v934 = vsel %vm926, %v912, 0
      %v937 = vsel %vm926, %v913, 0
      %v940 = vsel %vm926, %v919, 0
      %v943 = vsel %vm926, %v921, 0
      %v946 = vsel %vm926, %v923, 0
      %v949 = vsel %vm926, %v925, 0
      %951 = vmatprep.subr.bf16.mxu0 0
      %952 = vmatpush1.bf16.xpose.msra.mxu0 %v940
      %953 = vmatprep.subr.bf16.mxu0 0
      %954 = vmatpush1.bf16.xpose.msra.mxu0 %v943
      %955 = vmatprep.subr.bf16.mxu0 0
      %956 = vmatpush1.bf16.xpose.msra.mxu0 %v946
      %957 = vmatprep.subr.bf16.mxu0 0
      %958 = vmatpush1.bf16.xpose.msra.mxu0 %v949
      %959 = vmatprep.subr.bf16.mxu0 0
      %960 = vmatpush1.bf16.xpose.msra.mxu0 0
      %961 = vmatprep.subr.bf16.mxu0 0
      %962 = vmatpush1.bf16.xpose.msra.mxu0 0
      %963 = vmatprep.subr.bf16.mxu0 0
      %964 = vmatpush1.bf16.xpose.msra.mxu0 0
      %965 = vmatprep.subr.bf16.mxu0 0
      %966 = vmatpush1.bf16.xpose.msra.mxu0 0
      %967 = vmatprep.subr.bf16.mxu0 0
      %968 = vmatpush1.bf16.xpose.msra.mxu0 0
      %969 = vmatprep.subr.bf16.mxu0 0
      %970 = vmatpush1.bf16.xpose.msra.mxu0 0
      %971 = vmatprep.subr.bf16.mxu0 0
      %972 = vmatpush1.bf16.xpose.msra.mxu0 0
      %973 = vmatprep.subr.bf16.mxu0 0
      %974 = vmatpush1.bf16.xpose.msra.mxu0 0
      %975 = vmatprep.subr.bf16.mxu0 0
      %976 = vmatpush1.bf16.xpose.msra.mxu0 0
      %977 = vmatprep.subr.bf16.mxu0 0
      %978 = vmatpush1.bf16.xpose.msra.mxu0 0
      %979 = vmatprep.subr.bf16.mxu0 0
      %980 = vmatpush1.bf16.xpose.msra.mxu0 0
      %981 = vmatprep.subr.bf16.mxu0 0
      %982 = vmatpush1.bf16.xpose.msra.mxu0 0
      %983 = vmatprep.mubr.bf16.mxu0 0
      %984 = vmatmul.mubr.bf16.gmra.mrb[0].mxu0 %v928
      %v985 = vpop.f32.mrb[0].mxu0
      %v986 = vadd.f32 0.0, %v985
      %v987 = vpop.f32.mrb[0].mxu0
      %v988 = vpop.f32.mrb[0].mxu0
      %v989 = vadd.f32 0.0, %v988
      %v990 = vpop.f32.mrb[0].mxu0
      %991 = vmatprep.mubr.bf16.mxu0 0
      %992 = vmatmul.mubr.bf16.gmra.mrb[0].mxu0 %v931
      %v993 = vpop.f32.mrb[0].mxu0
      %v994 = vadd.f32 0.0, %v993
      %v995 = vpop.f32.mrb[0].mxu0
      %v996 = vpop.f32.mrb[0].mxu0
      %v997 = vadd.f32 0.0, %v996
      %v998 = vpop.f32.mrb[0].mxu0
      %999 = vmatprep.mubr.bf16.mxu0 0
      %1000 = vmatmul.mubr.bf16.gmra.mrb[0].mxu0 %v934
      %v1001 = vpop.f32.mrb[0].mxu0
      %v1002 = vadd.f32 0.0, %v1001
      %v1003 = vpop.f32.mrb[0].mxu0
      %v1004 = vpop.f32.mrb[0].mxu0
      %v1005 = vadd.f32 0.0, %v1004
      %v1006 = vpop.f32.mrb[0].mxu0
      %1007 = vmatprep.mubr.bf16.mxu0 0
      %1008 = vmatmul.mubr.bf16.gmra.mrb[0].mxu0 %v937
      %v1009 = vpop.f32.mrb[0].mxu0
      %v1010 = vadd.f32 0.0, %v1009
      %v1011 = vpop.f32.mrb[0].mxu0
      %v1012 = vpop.f32.mrb[0].mxu0
      %v1013 = vadd.f32 0.0, %v1012
      %v1014 = vpop.f32.mrb[0].mxu0
      %1015 = vdwg.mxu0
      %vm1016 = vcmask 523264
      %v1017 = vsel %vm1016, %v986, -inf
      %1018 = vmax.xlane.f32.xlu0 %v1017
      %v1019 = vpop.xlane.xlu0 %1018
      %v1020 = vsel %vm1016, %v989, -inf
      %1021 = vmax.xlane.f32.xlu0 %v1020
      %v1022 = vpop.xlane.xlu0 %1021
      %v1023 = vsel %vm1016, %v994, -inf
      %1024 = vmax.xlane.f32.xlu0 %v1023
      %v1025 = vpop.xlane.xlu0 %1024
      %v1026 = vsel %vm1016, %v997, -inf
      %1027 = vmax.xlane.f32.xlu0 %v1026
      %v1028 = vpop.xlane.xlu0 %1027
      %v1029 = vsel %vm1016, %v1002, -inf
      %1030 = vmax.xlane.f32.xlu0 %v1029
      %v1031 = vpop.xlane.xlu0 %1030
      %v1032 = vsel %vm1016, %v1005, -inf
      %1033 = vmax.xlane.f32.xlu0 %v1032
      %v1034 = vpop.xlane.xlu0 %1033
      %v1035 = vsel %vm1016, %v1010, -inf
      %1036 = vmax.xlane.f32.xlu0 %v1035
      %v1037 = vpop.xlane.xlu0 %1036
      %v1038 = vsel %vm1016, %v1013, -inf
      %1039 = vmax.xlane.f32.xlu0 %v1038
      %v1040 = vpop.xlane.xlu0 %1039
      %v1041 = vsub.f32 %v986, %v1019
      %v1042 = vsub.f32 %v989, %v1022
      %v1043 = vsub.f32 %v994, %v1025
      %v1044 = vsub.f32 %v997, %v1028
      %v1045 = vsub.f32 %v1002, %v1031
      %v1046 = vsub.f32 %v1005, %v1034
      %v1047 = vsub.f32 %v1010, %v1037
      %v1048 = vsub.f32 %v1013, %v1040
      %v1049 = vmul.f32 %v1041, 1.442695
      %v1050 = vpow.pop %v1049
      %v1051 = vmul.f32 %v1042, 1.442695
      %v1052 = vpow.pop %v1051
      %v1053 = vmul.f32 %v1043, 1.442695
      %v1054 = vpow.pop %v1053
      %v1055 = vmul.f32 %v1044, 1.442695
      %v1056 = vpow.pop %v1055
      %v1057 = vmul.f32 %v1045, 1.442695
      %v1058 = vpow.pop %v1057
      %v1059 = vmul.f32 %v1046, 1.442695
      %v1060 = vpow.pop %v1059
      %v1061 = vmul.f32 %v1047, 1.442695
      %v1062 = vpow.pop %v1061
      %v1063 = vmul.f32 %v1048, 1.442695
      %v1064 = vpow.pop %v1063
      %v1065 = vsel %vm1016, %v1050, 0.0
      %1066 = vadd.xlane.f32.xlu0 %v1065
      %v1067 = vpop.xlane.xlu0 %1066
      %v1068 = vsel %vm1016, %v1052, 0.0
      %1069 = vadd.xlane.f32.xlu0 %v1068
      %v1070 = vpop.xlane.xlu0 %1069
      %v1071 = vsel %vm1016, %v1054, 0.0
      %1072 = vadd.xlane.f32.xlu0 %v1071
      %v1073 = vpop.xlane.xlu0 %1072
      %v1074 = vsel %vm1016, %v1056, 0.0
      %1075 = vadd.xlane.f32.xlu0 %v1074
      %v1076 = vpop.xlane.xlu0 %1075
      %v1077 = vsel %vm1016, %v1058, 0.0
      %1078 = vadd.xlane.f32.xlu0 %v1077
      %v1079 = vpop.xlane.xlu0 %1078
      %v1080 = vsel %vm1016, %v1060, 0.0
      %1081 = vadd.xlane.f32.xlu0 %v1080
      %v1082 = vpop.xlane.xlu0 %1081
      %v1083 = vsel %vm1016, %v1062, 0.0
      %1084 = vadd.xlane.f32.xlu0 %v1083
      %v1085 = vpop.xlane.xlu0 %1084
      %v1086 = vsel %vm1016, %v1064, 0.0
      %1087 = vadd.xlane.f32.xlu0 %v1086
      %v1088 = vpop.xlane.xlu0 %1087
      %v1089 = vrcp.pop %v1067
      %v1090 = vrcp.pop %v1070
      %v1091 = vrcp.pop %v1073
      %v1092 = vrcp.pop %v1076
      %v1093 = vrcp.pop %v1079
      %v1094 = vrcp.pop %v1082
      %v1095 = vrcp.pop %v1085
      %v1096 = vrcp.pop %v1088
      %v1097 = vpack.c.bf16 %v1052, %v1050
      %v1098 = vpack.c.bf16 %v1056, %v1054
      %v1099 = vpack.c.bf16 %v1060, %v1058
      %v1100 = vpack.c.bf16 %v1064, %v1062
      %1101 = vrot.lane.b32.xlu0 %v910, 64
      %v1102 = vpop.permute.xlu0 %1101
      %1103 = vrot.lane.b32.xlu0 %v911, 64
      %v1104 = vpop.permute.xlu0 %1103
      %1105 = vrot.lane.b32.xlu0 %v912, 64
      %v1106 = vpop.permute.xlu0 %1105
      %1107 = vrot.lane.b32.xlu0 %v913, 64
      %v1108 = vpop.permute.xlu0 %1107
      %v1114 = vsel %vm1016, %v1097, 0
      %v1117 = vsel %vm1016, %v1098, 0
      %v1120 = vsel %vm1016, %v1099, 0
      %v1123 = vsel %vm1016, %v1100, 0
      %1125 = vmatprep.subr.bf16.mxu0 0
      %1126 = vmatpush1.bf16.msra.mxu0 %v1102
      %1127 = vmatprep.subr.bf16.mxu0 0
      %1128 = vmatpush1.bf16.msra.mxu0 %v1104
      %1129 = vmatprep.subr.bf16.mxu0 0
      %1130 = vmatpush1.bf16.msra.mxu0 %v1106
      %1131 = vmatprep.subr.bf16.mxu0 0
      %1132 = vmatpush1.bf16.msra.mxu0 %v1108
      %1133 = vmatprep.subr.bf16.mxu0 0
      %1134 = vmatpush1.bf16.msra.mxu0 0
      %1135 = vmatprep.subr.bf16.mxu0 0
      %1136 = vmatpush1.bf16.msra.mxu0 0
      %1137 = vmatprep.subr.bf16.mxu0 0
      %1138 = vmatpush1.bf16.msra.mxu0 0
      %1139 = vmatprep.subr.bf16.mxu0 0
      %1140 = vmatpush1.bf16.msra.mxu0 0
      %1141 = vmatprep.subr.bf16.mxu0 0
      %1142 = vmatpush1.bf16.msra.mxu0 0
      %1143 = vmatprep.subr.bf16.mxu0 0
      %1144 = vmatpush1.bf16.msra.mxu0 0
      %1145 = vmatprep.subr.bf16.mxu0 0
      %1146 = vmatpush1.bf16.msra.mxu0 0
      %1147 = vmatprep.subr.bf16.mxu0 0
      %1148 = vmatpush1.bf16.msra.mxu0 0
      %1149 = vmatprep.subr.bf16.mxu0 0
      %1150 = vmatpush1.bf16.msra.mxu0 0
      %1151 = vmatprep.subr.bf16.mxu0 0
      %1152 = vmatpush1.bf16.msra.mxu0 0
      %1153 = vmatprep.subr.bf16.mxu0 0
      %1154 = vmatpush1.bf16.msra.mxu0 0
      %1155 = vmatprep.subr.bf16.mxu0 0
      %1156 = vmatpush1.bf16.msra.mxu0 0
      %1157 = vmatprep.mubr.bf16.mxu0 0
      %1158 = vmatmul.mubr.bf16.gmra.mrb[0].mxu0 %v1114
      %v1159 = vpop.f32.mrb[0].mxu0
      %v1160 = vadd.f32 0.0, %v1159
      %v1161 = vpop.f32.mrb[0].mxu0
      %v1162 = vpop.f32.mrb[0].mxu0
      %v1163 = vadd.f32 0.0, %v1162
      %v1164 = vpop.f32.mrb[0].mxu0
      %1165 = vmatprep.mubr.bf16.mxu0 0
      %1166 = vmatmul.mubr.bf16.gmra.mrb[0].mxu0 %v1117
      %v1167 = vpop.f32.mrb[0].mxu0
      %v1168 = vadd.f32 0.0, %v1167
      %v1169 = vpop.f32.mrb[0].mxu0
      %v1170 = vpop.f32.mrb[0].mxu0
      %v1171 = vadd.f32 0.0, %v1170
      %v1172 = vpop.f32.mrb[0].mxu0
      %1173 = vmatprep.mubr.bf16.mxu0 0
      %1174 = vmatmul.mubr.bf16.gmra.mrb[0].mxu0 %v1120
      %v1175 = vpop.f32.mrb[0].mxu0
      %v1176 = vadd.f32 0.0, %v1175
      %v1177 = vpop.f32.mrb[0].mxu0
      %v1178 = vpop.f32.mrb[0].mxu0
      %v1179 = vadd.f32 0.0, %v1178
      %v1180 = vpop.f32.mrb[0].mxu0
      %1181 = vmatprep.mubr.bf16.mxu0 0
      %1182 = vmatmul.mubr.bf16.gmra.mrb[0].mxu0 %v1123
      %v1183 = vpop.f32.mrb[0].mxu0
      %v1184 = vadd.f32 0.0, %v1183
      %v1185 = vpop.f32.mrb[0].mxu0
      %v1186 = vpop.f32.mrb[0].mxu0
      %v1187 = vadd.f32 0.0, %v1186
      %v1188 = vpop.f32.mrb[0].mxu0
      %1189 = vdwg.mxu0
      %v1190 = vmul.f32 %v1160, %v1089
      %v1191 = vmul.f32 %v1163, %v1090
      %v1192 = vmul.f32 %v1168, %v1091
      %v1193 = vmul.f32 %v1171, %v1092
      %v1194 = vmul.f32 %v1176, %v1093
      %v1195 = vmul.f32 %v1179, %v1094
      %v1196 = vmul.f32 %v1184, %v1095
      %v1197 = vmul.f32 %v1187, %v1096
      %v1198 = vpack.c.bf16 %v1191, %v1190
      %v1199 = vpack.c.bf16 %v1193, %v1192
      %v1200 = vpack.c.bf16 %v1195, %v1194
      %v1201 = vpack.c.bf16 %v1197, %v1196
      %1202 = vst.msk [vmem:[#allocation2] sm:$0xff] %vm926, %v1198
      %1203 = vst.msk [vmem:[#allocation2 + $0x8] sm:$0xff] %vm926, %v1199
      %1204 = vst.msk [vmem:[#allocation2 + $0x10] sm:$0xff] %vm926, %v1200
      %1205 = vst.msk [vmem:[#allocation2 + $0x18] sm:$0xff] %vm926, %v1201
      %1206 = vrot.lane.b32.xlu0 %v910, 120
      %v1207 = vpop.permute.xlu0 %1206
      %1208 = vrot.lane.b32.xlu0 %v911, 120
      %v1209 = vpop.permute.xlu0 %1208
      %1210 = vrot.lane.b32.xlu0 %v912, 120
      %v1211 = vpop.permute.xlu0 %1210
      %1212 = vrot.lane.b32.xlu0 %v913, 120
      %v1213 = vpop.permute.xlu0 %1212
      %1214 = vrot.lane.b32.xlu0 %v910, 88
      %v1215 = vpop.permute.xlu0 %1214
      %1216 = vrot.lane.b32.xlu0 %v911, 88
      %v1217 = vpop.permute.xlu0 %1216
      %1218 = vrot.lane.b32.xlu0 %v912, 88
      %v1219 = vpop.permute.xlu0 %1218
      %1220 = vrot.lane.b32.xlu0 %v913, 88
      %v1221 = vpop.permute.xlu0 %1220
      %v1223 = vsel %vm926, %v1207, 0
      %v1226 = vsel %vm926, %v1209, 0
      %v1229 = vsel %vm926, %v1211, 0
      %v1232 = vsel %vm926, %v1213, 0
      %v1235 = vsel %vm926, %v1215, 0
      %v1238 = vsel %vm926, %v1217, 0
      %v1241 = vsel %vm926, %v1219, 0
      %v1244 = vsel %vm926, %v1221, 0
      %1246 = vmatprep.subr.bf16.mxu0 0
      %1247 = vmatpush1.bf16.xpose.msra.mxu0 %v1235
      %1248 = vmatprep.subr.bf16.mxu0 0
      %1249 = vmatpush1.bf16.xpose.msra.mxu0 %v1238
      %1250 = vmatprep.subr.bf16.mxu0 0
      %1251 = vmatpush1.bf16.xpose.msra.mxu0 %v1241
      %1252 = vmatprep.subr.bf16.mxu0 0
      %1253 = vmatpush1.bf16.xpose.msra.mxu0 %v1244
      %1254 = vmatprep.subr.bf16.mxu0 0
      %1255 = vmatpush1.bf16.xpose.msra.mxu0 0
      %1256 = vmatprep.subr.bf16.mxu0 0
      %1257 = vmatpush1.bf16.xpose.msra.mxu0 0
      %1258 = vmatprep.subr.bf16.mxu0 0
      %1259 = vmatpush1.bf16.xpose.msra.mxu0 0
      %1260 = vmatprep.subr.bf16.mxu0 0
      %1261 = vmatpush1.bf16.xpose.msra.mxu0 0
      %1262 = vmatprep.subr.bf16.mxu0 0
      %1263 = vmatpush1.bf16.xpose.msra.mxu0 0
      %1264 = vmatprep.subr.bf16.mxu0 0
      %1265 = vmatpush1.bf16.xpose.msra.mxu0 0
      %1266 = vmatprep.subr.bf16.mxu0 0
      %1267 = vmatpush1.bf16.xpose.msra.mxu0 0
      %1268 = vmatprep.subr.bf16.mxu0 0
      %1269 = vmatpush1.bf16.xpose.msra.mxu0 0
      %1270 = vmatprep.subr.bf16.mxu0 0
      %1271 = vmatpush1.bf16.xpose.msra.mxu0 0
      %1272 = vmatprep.subr.bf16.mxu0 0
      %1273 = vmatpush1.bf16.xpose.msra.mxu0 0
      %1274 = vmatprep.subr.bf16.mxu0 0
      %1275 = vmatpush1.bf16.xpose.msra.mxu0 0
      %1276 = vmatprep.subr.bf16.mxu0 0
      %1277 = vmatpush1.bf16.xpose.msra.mxu0 0
      %1278 = vmatprep.mubr.bf16.mxu0 0
      %1279 = vmatmul.mubr.bf16.gmra.mrb[0].mxu0 %v1223
      %v1280 = vpop.f32.mrb[0].mxu0
      %v1281 = vadd.f32 0.0, %v1280
      %v1282 = vpop.f32.mrb[0].mxu0
      %v1283 = vpop.f32.mrb[0].mxu0
      %v1284 = vadd.f32 0.0, %v1283
      %v1285 = vpop.f32.mrb[0].mxu0
      %1286 = vmatprep.mubr.bf16.mxu0 0
      %1287 = vmatmul.mubr.bf16.gmra.mrb[0].mxu0 %v1226
      %v1288 = vpop.f32.mrb[0].mxu0
      %v1289 = vadd.f32 0.0, %v1288
      %v1290 = vpop.f32.mrb[0].mxu0
      %v1291 = vpop.f32.mrb[0].mxu0
      %v1292 = vadd.f32 0.0, %v1291
      %v1293 = vpop.f32.mrb[0].mxu0
      %1294 = vmatprep.mubr.bf16.mxu0 0
      %1295 = vmatmul.mubr.bf16.gmra.mrb[0].mxu0 %v1229
      %v1296 = vpop.f32.mrb[0].mxu0
      %v1297 = vadd.f32 0.0, %v1296
      %v1298 = vpop.f32.mrb[0].mxu0
      %v1299 = vpop.f32.mrb[0].mxu0
      %v1300 = vadd.f32 0.0, %v1299
      %v1301 = vpop.f32.mrb[0].mxu0
      %1302 = vmatprep.mubr.bf16.mxu0 0
      %1303 = vmatmul.mubr.bf16.gmra.mrb[0].mxu0 %v1232
      %v1304 = vpop.f32.mrb[0].mxu0
      %v1305 = vadd.f32 0.0, %v1304
      %v1306 = vpop.f32.mrb[0].mxu0
      %v1307 = vpop.f32.mrb[0].mxu0
      %v1308 = vadd.f32 0.0, %v1307
      %v1309 = vpop.f32.mrb[0].mxu0
      %1310 = vdwg.mxu0
      %v1311 = vsel %vm1016, %v1281, -inf
      %1312 = vmax.xlane.f32.xlu0 %v1311
      %v1313 = vpop.xlane.xlu0 %1312
      %v1314 = vsel %vm1016, %v1284, -inf
      %1315 = vmax.xlane.f32.xlu0 %v1314
      %v1316 = vpop.xlane.xlu0 %1315
      %v1317 = vsel %vm1016, %v1289, -inf
      %1318 = vmax.xlane.f32.xlu0 %v1317
      %v1319 = vpop.xlane.xlu0 %1318
      %v1320 = vsel %vm1016, %v1292, -inf
      %1321 = vmax.xlane.f32.xlu0 %v1320
      %v1322 = vpop.xlane.xlu0 %1321
      %v1323 = vsel %vm1016, %v1297, -inf
      %1324 = vmax.xlane.f32.xlu0 %v1323
      %v1325 = vpop.xlane.xlu0 %1324
      %v1326 = vsel %vm1016, %v1300, -inf
      %1327 = vmax.xlane.f32.xlu0 %v1326
      %v1328 = vpop.xlane.xlu0 %1327
      %v1329 = vsel %vm1016, %v1305, -inf
      %1330 = vmax.xlane.f32.xlu0 %v1329
      %v1331 = vpop.xlane.xlu0 %1330
      %v1332 = vsel %vm1016, %v1308, -inf
      %1333 = vmax.xlane.f32.xlu0 %v1332
      %v1334 = vpop.xlane.xlu0 %1333
      %v1335 = vsub.f32 %v1281, %v1313
      %v1336 = vsub.f32 %v1284, %v1316
      %v1337 = vsub.f32 %v1289, %v1319
      %v1338 = vsub.f32 %v1292, %v1322
      %v1339 = vsub.f32 %v1297, %v1325
      %v1340 = vsub.f32 %v1300, %v1328
      %v1341 = vsub.f32 %v1305, %v1331
      %v1342 = vsub.f32 %v1308, %v1334
      %v1343 = vmul.f32 %v1335, 1.442695
      %v1344 = vpow.pop %v1343
      %v1345 = vmul.f32 %v1336, 1.442695
      %v1346 = vpow.pop %v1345
      %v1347 = vmul.f32 %v1337, 1.442695
      %v1348 = vpow.pop %v1347
      %v1349 = vmul.f32 %v1338, 1.442695
      %v1350 = vpow.pop %v1349
      %v1351 = vmul.f32 %v1339, 1.442695
      %v1352 = vpow.pop %v1351
      %v1353 = vmul.f32 %v1340, 1.442695
      %v1354 = vpow.pop %v1353
      %v1355 = vmul.f32 %v1341, 1.442695
      %v1356 = vpow.pop %v1355
      %v1357 = vmul.f32 %v1342, 1.442695
      %v1358 = vpow.pop %v1357
      %v1359 = vsel %vm1016, %v1344, 0.0
      %1360 = vadd.xlane.f32.xlu0 %v1359
      %v1361 = vpop.xlane.xlu0 %1360
      %v1362 = vsel %vm1016, %v1346, 0.0
      %1363 = vadd.xlane.f32.xlu0 %v1362
      %v1364 = vpop.xlane.xlu0 %1363
      %v1365 = vsel %vm1016, %v1348, 0.0
      %1366 = vadd.xlane.f32.xlu0 %v1365
      %v1367 = vpop.xlane.xlu0 %1366
      %v1368 = vsel %vm1016, %v1350, 0.0
      %1369 = vadd.xlane.f32.xlu0 %v1368
      %v1370 = vpop.xlane.xlu0 %1369
      %v1371 = vsel %vm1016, %v1352, 0.0
      %1372 = vadd.xlane.f32.xlu0 %v1371
      %v1373 = vpop.xlane.xlu0 %1372
      %v1374 = vsel %vm1016, %v1354, 0.0
      %1375 = vadd.xlane.f32.xlu0 %v1374
      %v1376 = vpop.xlane.xlu0 %1375
      %v1377 = vsel %vm1016, %v1356, 0.0
      %1378 = vadd.xlane.f32.xlu0 %v1377
      %v1379 = vpop.xlane.xlu0 %1378
      %v1380 = vsel %vm1016, %v1358, 0.0
      %1381 = vadd.xlane.f32.xlu0 %v1380
      %v1382 = vpop.xlane.xlu0 %1381
      %v1383 = vrcp.pop %v1361
      %v1384 = vrcp.pop %v1364
      %v1385 = vrcp.pop %v1367
      %v1386 = vrcp.pop %v1370
      %v1387 = vrcp.pop %v1373
      %v1388 = vrcp.pop %v1376
      %v1389 = vrcp.pop %v1379
      %v1390 = vrcp.pop %v1382
      %v1391 = vpack.c.bf16 %v1346, %v1344
      %v1392 = vpack.c.bf16 %v1350, %v1348
      %v1393 = vpack.c.bf16 %v1354, %v1352
      %v1394 = vpack.c.bf16 %v1358, %v1356
      %1395 = vrot.lane.b32.xlu0 %v910, 56
      %v1396 = vpop.permute.xlu0 %1395
      %1397 = vrot.lane.b32.xlu0 %v911, 56
      %v1398 = vpop.permute.xlu0 %1397
      %1399 = vrot.lane.b32.xlu0 %v912, 56
      %v1400 = vpop.permute.xlu0 %1399
      %1401 = vrot.lane.b32.xlu0 %v913, 56
      %v1402 = vpop.permute.xlu0 %1401
      %v1408 = vsel %vm1016, %v1391, 0
      %v1411 = vsel %vm1016, %v1392, 0
      %v1414 = vsel %vm1016, %v1393, 0
      %v1417 = vsel %vm1016, %v1394, 0
      %1419 = vmatprep.subr.bf16.mxu0 0
      %1420 = vmatpush1.bf16.msra.mxu0 %v1396
      %1421 = vmatprep.subr.bf16.mxu0 0
      %1422 = vmatpush1.bf16.msra.mxu0 %v1398
      %1423 = vmatprep.subr.bf16.mxu0 0
      %1424 = vmatpush1.bf16.msra.mxu0 %v1400
      %1425 = vmatprep.subr.bf16.mxu0 0
      %1426 = vmatpush1.bf16.msra.mxu0 %v1402
      %1427 = vmatprep.subr.bf16.mxu0 0
      %1428 = vmatpush1.bf16.msra.mxu0 0
      %1429 = vmatprep.subr.bf16.mxu0 0
      %1430 = vmatpush1.bf16.msra.mxu0 0
      %1431 = vmatprep.subr.bf16.mxu0 0
      %1432 = vmatpush1.bf16.msra.mxu0 0
      %1433 = vmatprep.subr.bf16.mxu0 0
      %1434 = vmatpush1.bf16.msra.mxu0 0
      %1435 = vmatprep.subr.bf16.mxu0 0
      %1436 = vmatpush1.bf16.msra.mxu0 0
      %1437 = vmatprep.subr.bf16.mxu0 0
      %1438 = vmatpush1.bf16.msra.mxu0 0
      %1439 = vmatprep.subr.bf16.mxu0 0
      %1440 = vmatpush1.bf16.msra.mxu0 0
      %1441 = vmatprep.subr.bf16.mxu0 0
      %1442 = vmatpush1.bf16.msra.mxu0 0
      %1443 = vmatprep.subr.bf16.mxu0 0
      %1444 = vmatpush1.bf16.msra.mxu0 0
      %1445 = vmatprep.subr.bf16.mxu0 0
      %1446 = vmatpush1.bf16.msra.mxu0 0
      %1447 = vmatprep.subr.bf16.mxu0 0
      %1448 = vmatpush1.bf16.msra.mxu0 0
      %1449 = vmatprep.subr.bf16.mxu0 0
      %1450 = vmatpush1.bf16.msra.mxu0 0
      %1451 = vmatprep.mubr.bf16.mxu0 0
      %1452 = vmatmul.mubr.bf16.gmra.mrb[0].mxu0 %v1408
      %v1453 = vpop.f32.mrb[0].mxu0
      %v1454 = vadd.f32 0.0, %v1453
      %v1455 = vpop.f32.mrb[0].mxu0
      %v1456 = vpop.f32.mrb[0].mxu0
      %v1457 = vadd.f32 0.0, %v1456
      %v1458 = vpop.f32.mrb[0].mxu0
      %1459 = vmatprep.mubr.bf16.mxu0 0
      %1460 = vmatmul.mubr.bf16.gmra.mrb[0].mxu0 %v1411
      %v1461 = vpop.f32.mrb[0].mxu0
      %v1462 = vadd.f32 0.0, %v1461
      %v1463 = vpop.f32.mrb[0].mxu0
      %v1464 = vpop.f32.mrb[0].mxu0
      %v1465 = vadd.f32 0.0, %v1464
      %v1466 = vpop.f32.mrb[0].mxu0
      %1467 = vmatprep.mubr.bf16.mxu0 0
      %1468 = vmatmul.mubr.bf16.gmra.mrb[0].mxu0 %v1414
      %v1469 = vpop.f32.mrb[0].mxu0
      %v1470 = vadd.f32 0.0, %v1469
      %v1471 = vpop.f32.mrb[0].mxu0
      %v1472 = vpop.f32.mrb[0].mxu0
      %v1473 = vadd.f32 0.0, %v1472
      %v1474 = vpop.f32.mrb[0].mxu0
      %1475 = vmatprep.mubr.bf16.mxu0 0
      %1476 = vmatmul.mubr.bf16.gmra.mrb[0].mxu0 %v1417
      %v1477 = vpop.f32.mrb[0].mxu0
      %v1478 = vadd.f32 0.0, %v1477
      %v1479 = vpop.f32.mrb[0].mxu0
      %v1480 = vpop.f32.mrb[0].mxu0
      %v1481 = vadd.f32 0.0, %v1480
      %v1482 = vpop.f32.mrb[0].mxu0
      %1483 = vdwg.mxu0
      %v1484 = vmul.f32 %v1454, %v1383
      %v1485 = vmul.f32 %v1457, %v1384
      %v1486 = vmul.f32 %v1462, %v1385
      %v1487 = vmul.f32 %v1465, %v1386
      %v1488 = vmul.f32 %v1470, %v1387
      %v1489 = vmul.f32 %v1473, %v1388
      %v1490 = vmul.f32 %v1478, %v1389
      %v1491 = vmul.f32 %v1481, %v1390
      %v1492 = vpack.c.bf16 %v1485, %v1484
      %v1493 = vpack.c.bf16 %v1487, %v1486
      %v1494 = vpack.c.bf16 %v1489, %v1488
      %v1495 = vpack.c.bf16 %v1491, %v1490
      %1500 = vrot.lane.b32.xlu0 %v1492, 8
      %v1501 = vpop.permute.xlu0 %1500
      %1502 = vrot.lane.b32.xlu0 %v1493, 8
      %v1503 = vpop.permute.xlu0 %1502
      %1504 = vrot.lane.b32.xlu0 %v1494, 8
      %v1505 = vpop.permute.xlu0 %1504
      %1506 = vrot.lane.b32.xlu0 %v1495, 8
      %v1507 = vpop.permute.xlu0 %1506
      %vm1512 = vcmask 130112
      %1513 = vst.msk [vmem:[#allocation2] sm:$0xff] %vm1512, %v1501
      %1514 = vst.msk [vmem:[#allocation2 + $0x8] sm:$0xff] %vm1512, %v1503
      %1515 = vst.msk [vmem:[#allocation2 + $0x10] sm:$0xff] %vm1512, %v1505
      %1516 = vst.msk [vmem:[#allocation2 + $0x18] sm:$0xff] %vm1512, %v1507
      %1517 = vrot.lane.b32.xlu0 %v910, 112
      %v1518 = vpop.permute.xlu0 %1517
      %1519 = vrot.lane.b32.xlu0 %v911, 112
      %v1520 = vpop.permute.xlu0 %1519
      %1521 = vrot.lane.b32.xlu0 %v912, 112
      %v1522 = vpop.permute.xlu0 %1521
      %1523 = vrot.lane.b32.xlu0 %v913, 112
      %v1524 = vpop.permute.xlu0 %1523
      %1525 = vrot.lane.b32.xlu0 %v910, 80
      %v1526 = vpop.permute.xlu0 %1525
      %1527 = vrot.lane.b32.xlu0 %v911, 80
      %v1528 = vpop.permute.xlu0 %1527
      %1529 = vrot.lane.b32.xlu0 %v912, 80
      %v1530 = vpop.permute.xlu0 %1529
      %1531 = vrot.lane.b32.xlu0 %v913, 80
      %v1532 = vpop.permute.xlu0 %1531
      %v1534 = vsel %vm926, %v1518, 0
      %v1537 = vsel %vm926, %v1520, 0
      %v1540 = vsel %vm926, %v1522, 0
      %v1543 = vsel %vm926, %v1524, 0
      %v1546 = vsel %vm926, %v1526, 0
      %v1549 = vsel %vm926, %v1528, 0
      %v1552 = vsel %vm926, %v1530, 0
      %v1555 = vsel %vm926, %v1532, 0
      %1557 = vmatprep.subr.bf16.mxu0 0
      %1558 = vmatpush1.bf16.xpose.msra.mxu0 %v1546
      %1559 = vmatprep.subr.bf16.mxu0 0
      %1560 = vmatpush1.bf16.xpose.msra.mxu0 %v1549
      %1561 = vmatprep.subr.bf16.mxu0 0
      %1562 = vmatpush1.bf16.xpose.msra.mxu0 %v1552
      %1563 = vmatprep.subr.bf16.mxu0 0
      %1564 = vmatpush1.bf16.xpose.msra.mxu0 %v1555
      %1565 = vmatprep.subr.bf16.mxu0 0
      %1566 = vmatpush1.bf16.xpose.msra.mxu0 0
      %1567 = vmatprep.subr.bf16.mxu0 0
      %1568 = vmatpush1.bf16.xpose.msra.mxu0 0
      %1569 = vmatprep.subr.bf16.mxu0 0
      %1570 = vmatpush1.bf16.xpose.msra.mxu0 0
      %1571 = vmatprep.subr.bf16.mxu0 0
      %1572 = vmatpush1.bf16.xpose.msra.mxu0 0
      %1573 = vmatprep.subr.bf16.mxu0 0
      %1574 = vmatpush1.bf16.xpose.msra.mxu0 0
      %1575 = vmatprep.subr.bf16.mxu0 0
      %1576 = vmatpush1.bf16.xpose.msra.mxu0 0
      %1577 = vmatprep.subr.bf16.mxu0 0
      %1578 = vmatpush1.bf16.xpose.msra.mxu0 0
      %1579 = vmatprep.subr.bf16.mxu0 0
      %1580 = vmatpush1.bf16.xpose.msra.mxu0 0
      %1581 = vmatprep.subr.bf16.mxu0 0
      %1582 = vmatpush1.bf16.xpose.msra.mxu0 0
      %1583 = vmatprep.subr.bf16.mxu0 0
      %1584 = vmatpush1.bf16.xpose.msra.mxu0 0
      %1585 = vmatprep.subr.bf16.mxu0 0
      %1586 = vmatpush1.bf16.xpose.msra.mxu0 0
      %1587 = vmatprep.subr.bf16.mxu0 0
      %1588 = vmatpush1.bf16.xpose.msra.mxu0 0
      %1589 = vmatprep.mubr.bf16.mxu0 0
      %1590 = vmatmul.mubr.bf16.gmra.mrb[0].mxu0 %v1534
      %v1591 = vpop.f32.mrb[0].mxu0
      %v1592 = vadd.f32 0.0, %v1591
      %v1593 = vpop.f32.mrb[0].mxu0
      %v1594 = vpop.f32.mrb[0].mxu0
      %v1595 = vadd.f32 0.0, %v1594
      %v1596 = vpop.f32.mrb[0].mxu0
      %1597 = vmatprep.mubr.bf16.mxu0 0
      %1598 = vmatmul.mubr.bf16.gmra.mrb[0].mxu0 %v1537
      %v1599 = vpop.f32.mrb[0].mxu0
      %v1600 = vadd.f32 0.0, %v1599
      %v1601 = vpop.f32.mrb[0].mxu0
      %v1602 = vpop.f32.mrb[0].mxu0
      %v1603 = vadd.f32 0.0, %v1602
      %v1604 = vpop.f32.mrb[0].mxu0
      %1605 = vmatprep.mubr.bf16.mxu0 0
      %1606 = vmatmul.mubr.bf16.gmra.mrb[0].mxu0 %v1540
      %v1607 = vpop.f32.mrb[0].mxu0
      %v1608 = vadd.f32 0.0, %v1607
      %v1609 = vpop.f32.mrb[0].mxu0
      %v1610 = vpop.f32.mrb[0].mxu0
      %v1611 = vadd.f32 0.0, %v1610
      %v1612 = vpop.f32.mrb[0].mxu0
      %1613 = vmatprep.mubr.bf16.mxu0 0
      %1614 = vmatmul.mubr.bf16.gmra.mrb[0].mxu0 %v1543
      %v1615 = vpop.f32.mrb[0].mxu0
      %v1616 = vadd.f32 0.0, %v1615
      %v1617 = vpop.f32.mrb[0].mxu0
      %v1618 = vpop.f32.mrb[0].mxu0
      %v1619 = vadd.f32 0.0, %v1618
      %v1620 = vpop.f32.mrb[0].mxu0
      %1621 = vdwg.mxu0
      %v1622 = vsel %vm1016, %v1592, -inf
      %1623 = vmax.xlane.f32.xlu0 %v1622
      %v1624 = vpop.xlane.xlu0 %1623
      %v1625 = vsel %vm1016, %v1595, -inf
      %1626 = vmax.xlane.f32.xlu0 %v1625
      %v1627 = vpop.xlane.xlu0 %1626
      %v1628 = vsel %vm1016, %v1600, -inf
      %1629 = vmax.xlane.f32.xlu0 %v1628
      %v1630 = vpop.xlane.xlu0 %1629
      %v1631 = vsel %vm1016, %v1603, -inf
      %1632 = vmax.xlane.f32.xlu0 %v1631
      %v1633 = vpop.xlane.xlu0 %1632
      %v1634 = vsel %vm1016, %v1608, -inf
      %1635 = vmax.xlane.f32.xlu0 %v1634
      %v1636 = vpop.xlane.xlu0 %1635
      %v1637 = vsel %vm1016, %v1611, -inf
      %1638 = vmax.xlane.f32.xlu0 %v1637
      %v1639 = vpop.xlane.xlu0 %1638
      %v1640 = vsel %vm1016, %v1616, -inf
      %1641 = vmax.xlane.f32.xlu0 %v1640
      %v1642 = vpop.xlane.xlu0 %1641
      %v1643 = vsel %vm1016, %v1619, -inf
      %1644 = vmax.xlane.f32.xlu0 %v1643
      %v1645 = vpop.xlane.xlu0 %1644
      %v1646 = vsub.f32 %v1592, %v1624
      %v1647 = vsub.f32 %v1595, %v1627
      %v1648 = vsub.f32 %v1600, %v1630
      %v1649 = vsub.f32 %v1603, %v1633
      %v1650 = vsub.f32 %v1608, %v1636
      %v1651 = vsub.f32 %v1611, %v1639
      %v1652 = vsub.f32 %v1616, %v1642
      %v1653 = vsub.f32 %v1619, %v1645
      %v1654 = vmul.f32 %v1646, 1.442695
      %v1655 = vpow.pop %v1654
      %v1656 = vmul.f32 %v1647, 1.442695
      %v1657 = vpow.pop %v1656
      %v1658 = vmul.f32 %v1648, 1.442695
      %v1659 = vpow.pop %v1658
      %v1660 = vmul.f32 %v1649, 1.442695
      %v1661 = vpow.pop %v1660
      %v1662 = vmul.f32 %v1650, 1.442695
      %v1663 = vpow.pop %v1662
      %v1664 = vmul.f32 %v1651, 1.442695
      %v1665 = vpow.pop %v1664
      %v1666 = vmul.f32 %v1652, 1.442695
      %v1667 = vpow.pop %v1666
      %v1668 = vmul.f32 %v1653, 1.442695
      %v1669 = vpow.pop %v1668
      %v1670 = vsel %vm1016, %v1655, 0.0
      %1671 = vadd.xlane.f32.xlu0 %v1670
      %v1672 = vpop.xlane.xlu0 %1671
      %v1673 = vsel %vm1016, %v1657, 0.0
      %1674 = vadd.xlane.f32.xlu0 %v1673
      %v1675 = vpop.xlane.xlu0 %1674
      %v1676 = vsel %vm1016, %v1659, 0.0
      %1677 = vadd.xlane.f32.xlu0 %v1676
      %v1678 = vpop.xlane.xlu0 %1677
      %v1679 = vsel %vm1016, %v1661, 0.0
      %1680 = vadd.xlane.f32.xlu0 %v1679
      %v1681 = vpop.xlane.xlu0 %1680
      %v1682 = vsel %vm1016, %v1663, 0.0
      %1683 = vadd.xlane.f32.xlu0 %v1682
      %v1684 = vpop.xlane.xlu0 %1683
      %v1685 = vsel %vm1016, %v1665, 0.0
      %1686 = vadd.xlane.f32.xlu0 %v1685
      %v1687 = vpop.xlane.xlu0 %1686
      %v1688 = vsel %vm1016, %v1667, 0.0
      %1689 = vadd.xlane.f32.xlu0 %v1688
      %v1690 = vpop.xlane.xlu0 %1689
      %v1691 = vsel %vm1016, %v1669, 0.0
      %1692 = vadd.xlane.f32.xlu0 %v1691
      %v1693 = vpop.xlane.xlu0 %1692
      %v1694 = vrcp.pop %v1672
      %v1695 = vrcp.pop %v1675
      %v1696 = vrcp.pop %v1678
      %v1697 = vrcp.pop %v1681
      %v1698 = vrcp.pop %v1684
      %v1699 = vrcp.pop %v1687
      %v1700 = vrcp.pop %v1690
      %v1701 = vrcp.pop %v1693
      %v1702 = vpack.c.bf16 %v1657, %v1655
      %v1703 = vpack.c.bf16 %v1661, %v1659
      %v1704 = vpack.c.bf16 %v1665, %v1663
      %v1705 = vpack.c.bf16 %v1669, %v1667
      %1706 = vrot.lane.b32.xlu0 %v910, 48
      %v1707 = vpop.permute.xlu0 %1706
      %1708 = vrot.lane.b32.xlu0 %v911, 48
      %v1709 = vpop.permute.xlu0 %1708
      %1710 = vrot.lane.b32.xlu0 %v912, 48
      %v1711 = vpop.permute.xlu0 %1710
      %1712 = vrot.lane.b32.xlu0 %v913, 48
      %v1713 = vpop.permute.xlu0 %1712
      %v1719 = vsel %vm1016, %v1702, 0
      %v1722 = vsel %vm1016, %v1703, 0
      %v1725 = vsel %vm1016, %v1704, 0
      %v1728 = vsel %vm1016, %v1705, 0
      %1730 = vmatprep.subr.bf16.mxu0 0
      %1731 = vmatpush1.bf16.msra.mxu0 %v1707
      %1732 = vmatprep.subr.bf16.mxu0 0
      %1733 = vmatpush1.bf16.msra.mxu0 %v1709
      %1734 = vmatprep.subr.bf16.mxu0 0
      %1735 = vmatpush1.bf16.msra.mxu0 %v1711
      %1736 = vmatprep.subr.bf16.mxu0 0
      %1737 = vmatpush1.bf16.msra.mxu0 %v1713
      %1738 = vmatprep.subr.bf16.mxu0 0
      %1739 = vmatpush1.bf16.msra.mxu0 0
      %1740 = vmatprep.subr.bf16.mxu0 0
      %1741 = vmatpush1.bf16.msra.mxu0 0
      %1742 = vmatprep.subr.bf16.mxu0 0
      %1743 = vmatpush1.bf16.msra.mxu0 0
      %1744 = vmatprep.subr.bf16.mxu0 0
      %1745 = vmatpush1.bf16.msra.mxu0 0
      %1746 = vmatprep.subr.bf16.mxu0 0
      %1747 = vmatpush1.bf16.msra.mxu0 0
      %1748 = vmatprep.subr.bf16.mxu0 0
      %1749 = vmatpush1.bf16.msra.mxu0 0
      %1750 = vmatprep.subr.bf16.mxu0 0
      %1751 = vmatpush1.bf16.msra.mxu0 0
      %1752 = vmatprep.subr.bf16.mxu0 0
      %1753 = vmatpush1.bf16.msra.mxu0 0
      %1754 = vmatprep.subr.bf16.mxu0 0
      %1755 = vmatpush1.bf16.msra.mxu0 0
      %1756 = vmatprep.subr.bf16.mxu0 0
      %1757 = vmatpush1.bf16.msra.mxu0 0
      %1758 = vmatprep.subr.bf16.mxu0 0
      %1759 = vmatpush1.bf16.msra.mxu0 0
      %1760 = vmatprep.subr.bf16.mxu0 0
      %1761 = vmatpush1.bf16.msra.mxu0 0
      %1762 = vmatprep.mubr.bf16.mxu0 0
      %1763 = vmatmul.mubr.bf16.gmra.mrb[0].mxu0 %v1719
      %v1764 = vpop.f32.mrb[0].mxu0
      %v1765 = vadd.f32 0.0, %v1764
      %v1766 = vpop.f32.mrb[0].mxu0
      %v1767 = vpop.f32.mrb[0].mxu0
      %v1768 = vadd.f32 0.0, %v1767
      %v1769 = vpop.f32.mrb[0].mxu0
      %1770 = vmatprep.mubr.bf16.mxu0 0
      %1771 = vmatmul.mubr.bf16.gmra.mrb[0].mxu0 %v1722
      %v1772 = vpop.f32.mrb[0].mxu0
      %v1773 = vadd.f32 0.0, %v1772
      %v1774 = vpop.f32.mrb[0].mxu0
      %v1775 = vpop.f32.mrb[0].mxu0
      %v1776 = vadd.f32 0.0, %v1775
      %v1777 = vpop.f32.mrb[0].mxu0
      %1778 = vmatprep.mubr.bf16.mxu0 0
      %1779 = vmatmul.mubr.bf16.gmra.mrb[0].mxu0 %v1725
      %v1780 = vpop.f32.mrb[0].mxu0
      %v1781 = vadd.f32 0.0, %v1780
      %v1782 = vpop.f32.mrb[0].mxu0
      %v1783 = vpop.f32.mrb[0].mxu0
      %v1784 = vadd.f32 0.0, %v1783
      %v1785 = vpop.f32.mrb[0].mxu0
      %1786 = vmatprep.mubr.bf16.mxu0 0
      %1787 = vmatmul.mubr.bf16.gmra.mrb[0].mxu0 %v1728
      %v1788 = vpop.f32.mrb[0].mxu0
      %v1789 = vadd.f32 0.0, %v1788
      %v1790 = vpop.f32.mrb[0].mxu0
      %v1791 = vpop.f32.mrb[0].mxu0
      %v1792 = vadd.f32 0.0, %v1791
      %v1793 = vpop.f32.mrb[0].mxu0
      %1794 = vdwg.mxu0
      %v1795 = vmul.f32 %v1765, %v1694
      %v1796 = vmul.f32 %v1768, %v1695
      %v1797 = vmul.f32 %v1773, %v1696
      %v1798 = vmul.f32 %v1776, %v1697
      %v1799 = vmul.f32 %v1781, %v1698
      %v1800 = vmul.f32 %v1784, %v1699
      %v1801 = vmul.f32 %v1789, %v1700
      %v1802 = vmul.f32 %v1792, %v1701
      %v1803 = vpack.c.bf16 %v1796, %v1795
      %v1804 = vpack.c.bf16 %v1798, %v1797
      %v1805 = vpack.c.bf16 %v1800, %v1799
      %v1806 = vpack.c.bf16 %v1802, %v1801
      %1811 = vrot.lane.b32.xlu0 %v1803, 16
      %v1812 = vpop.permute.xlu0 %1811
      %1813 = vrot.lane.b32.xlu0 %v1804, 16
      %v1814 = vpop.permute.xlu0 %1813
      %1815 = vrot.lane.b32.xlu0 %v1805, 16
      %v1816 = vpop.permute.xlu0 %1815
      %1817 = vrot.lane.b32.xlu0 %v1806, 16
      %v1818 = vpop.permute.xlu0 %1817
      %vm1823 = vcmask 195712
      %1824 = vst.msk [vmem:[#allocation2] sm:$0xff] %vm1823, %v1812
      %1825 = vst.msk [vmem:[#allocation2 + $0x8] sm:$0xff] %vm1823, %v1814
      %1826 = vst.msk [vmem:[#allocation2 + $0x10] sm:$0xff] %vm1823, %v1816
      %1827 = vst.msk [vmem:[#allocation2 + $0x18] sm:$0xff] %vm1823, %v1818
      %1828 = vrot.lane.b32.xlu0 %v910, 104
      %v1829 = vpop.permute.xlu0 %1828
      %1830 = vrot.lane.b32.xlu0 %v911, 104
      %v1831 = vpop.permute.xlu0 %1830
      %1832 = vrot.lane.b32.xlu0 %v912, 104
      %v1833 = vpop.permute.xlu0 %1832
      %1834 = vrot.lane.b32.xlu0 %v913, 104
      %v1835 = vpop.permute.xlu0 %1834
      %1836 = vrot.lane.b32.xlu0 %v910, 72
      %v1837 = vpop.permute.xlu0 %1836
      %1838 = vrot.lane.b32.xlu0 %v911, 72
      %v1839 = vpop.permute.xlu0 %1838
      %1840 = vrot.lane.b32.xlu0 %v912, 72
      %v1841 = vpop.permute.xlu0 %1840
      %1842 = vrot.lane.b32.xlu0 %v913, 72
      %v1843 = vpop.permute.xlu0 %1842
      %v1845 = vsel %vm926, %v1829, 0
      %v1848 = vsel %vm926, %v1831, 0
      %v1851 = vsel %vm926, %v1833, 0
      %v1854 = vsel %vm926, %v1835, 0
      %v1857 = vsel %vm926, %v1837, 0
      %v1860 = vsel %vm926, %v1839, 0
      %v1863 = vsel %vm926, %v1841, 0
      %v1866 = vsel %vm926, %v1843, 0
      %1868 = vmatprep.subr.bf16.mxu0 0
      %1869 = vmatpush1.bf16.xpose.msra.mxu0 %v1857
      %1870 = vmatprep.subr.bf16.mxu0 0
      %1871 = vmatpush1.bf16.xpose.msra.mxu0 %v1860
      %1872 = vmatprep.subr.bf16.mxu0 0
      %1873 = vmatpush1.bf16.xpose.msra.mxu0 %v1863
      %1874 = vmatprep.subr.bf16.mxu0 0
      %1875 = vmatpush1.bf16.xpose.msra.mxu0 %v1866
      %1876 = vmatprep.subr.bf16.mxu0 0
      %1877 = vmatpush1.bf16.xpose.msra.mxu0 0
      %1878 = vmatprep.subr.bf16.mxu0 0
      %1879 = vmatpush1.bf16.xpose.msra.mxu0 0
      %1880 = vmatprep.subr.bf16.mxu0 0
      %1881 = vmatpush1.bf16.xpose.msra.mxu0 0
      %1882 = vmatprep.subr.bf16.mxu0 0
      %1883 = vmatpush1.bf16.xpose.msra.mxu0 0
      %1884 = vmatprep.subr.bf16.mxu0 0
      %1885 = vmatpush1.bf16.xpose.msra.mxu0 0
      %1886 = vmatprep.subr.bf16.mxu0 0
      %1887 = vmatpush1.bf16.xpose.msra.mxu0 0
      %1888 = vmatprep.subr.bf16.mxu0 0
      %1889 = vmatpush1.bf16.xpose.msra.mxu0 0
      %1890 = vmatprep.subr.bf16.mxu0 0
      %1891 = vmatpush1.bf16.xpose.msra.mxu0 0
      %1892 = vmatprep.subr.bf16.mxu0 0
      %1893 = vmatpush1.bf16.xpose.msra.mxu0 0
      %1894 = vmatprep.subr.bf16.mxu0 0
      %1895 = vmatpush1.bf16.xpose.msra.mxu0 0
      %1896 = vmatprep.subr.bf16.mxu0 0
      %1897 = vmatpush1.bf16.xpose.msra.mxu0 0
      %1898 = vmatprep.subr.bf16.mxu0 0
      %1899 = vmatpush1.bf16.xpose.msra.mxu0 0
      %1900 = vmatprep.mubr.bf16.mxu0 0
      %1901 = vmatmul.mubr.bf16.gmra.mrb[0].mxu0 %v1845
      %v1902 = vpop.f32.mrb[0].mxu0
      %v1903 = vadd.f32 0.0, %v1902
      %v1904 = vpop.f32.mrb[0].mxu0
      %v1905 = vpop.f32.mrb[0].mxu0
      %v1906 = vadd.f32 0.0, %v1905
      %v1907 = vpop.f32.mrb[0].mxu0
      %1908 = vmatprep.mubr.bf16.mxu0 0
      %1909 = vmatmul.mubr.bf16.gmra.mrb[0].mxu0 %v1848
      %v1910 = vpop.f32.mrb[0].mxu0
      %v1911 = vadd.f32 0.0, %v1910
      %v1912 = vpop.f32.mrb[0].mxu0
      %v1913 = vpop.f32.mrb[0].mxu0
      %v1914 = vadd.f32 0.0, %v1913
      %v1915 = vpop.f32.mrb[0].mxu0
      %1916 = vmatprep.mubr.bf16.mxu0 0
      %1917 = vmatmul.mubr.bf16.gmra.mrb[0].mxu0 %v1851
      %v1918 = vpop.f32.mrb[0].mxu0
      %v1919 = vadd.f32 0.0, %v1918
      %v1920 = vpop.f32.mrb[0].mxu0
      %v1921 = vpop.f32.mrb[0].mxu0
      %v1922 = vadd.f32 0.0, %v1921
      %v1923 = vpop.f32.mrb[0].mxu0
      %1924 = vmatprep.mubr.bf16.mxu0 0
      %1925 = vmatmul.mubr.bf16.gmra.mrb[0].mxu0 %v1854
      %v1926 = vpop.f32.mrb[0].mxu0
      %v1927 = vadd.f32 0.0, %v1926
      %v1928 = vpop.f32.mrb[0].mxu0
      %v1929 = vpop.f32.mrb[0].mxu0
      %v1930 = vadd.f32 0.0, %v1929
      %v1931 = vpop.f32.mrb[0].mxu0
      %1932 = vdwg.mxu0
      %v1933 = vsel %vm1016, %v1903, -inf
      %1934 = vmax.xlane.f32.xlu0 %v1933
      %v1935 = vpop.xlane.xlu0 %1934
      %v1936 = vsel %vm1016, %v1906, -inf
      %1937 = vmax.xlane.f32.xlu0 %v1936
      %v1938 = vpop.xlane.xlu0 %1937
      %v1939 = vsel %vm1016, %v1911, -inf
      %1940 = vmax.xlane.f32.xlu0 %v1939
      %v1941 = vpop.xlane.xlu0 %1940
      %v1942 = vsel %vm1016, %v1914, -inf
      %1943 = vmax.xlane.f32.xlu0 %v1942
      %v1944 = vpop.xlane.xlu0 %1943
      %v1945 = vsel %vm1016, %v1919, -inf
      %1946 = vmax.xlane.f32.xlu0 %v1945
      %v1947 = vpop.xlane.xlu0 %1946
      %v1948 = vsel %vm1016, %v1922, -inf
      %1949 = vmax.xlane.f32.xlu0 %v1948
      %v1950 = vpop.xlane.xlu0 %1949
      %v1951 = vsel %vm1016, %v1927, -inf
      %1952 = vmax.xlane.f32.xlu0 %v1951
      %v1953 = vpop.xlane.xlu0 %1952
      %v1954 = vsel %vm1016, %v1930, -inf
      %1955 = vmax.xlane.f32.xlu0 %v1954
      %v1956 = vpop.xlane.xlu0 %1955
      %v1957 = vsub.f32 %v1903, %v1935
      %v1958 = vsub.f32 %v1906, %v1938
      %v1959 = vsub.f32 %v1911, %v1941
      %v1960 = vsub.f32 %v1914, %v1944
      %v1961 = vsub.f32 %v1919, %v1947
      %v1962 = vsub.f32 %v1922, %v1950
      %v1963 = vsub.f32 %v1927, %v1953
      %v1964 = vsub.f32 %v1930, %v1956
      %v1965 = vmul.f32 %v1957, 1.442695
      %v1966 = vpow.pop %v1965
      %v1967 = vmul.f32 %v1958, 1.442695
      %v1968 = vpow.pop %v1967
      %v1969 = vmul.f32 %v1959, 1.442695
      %v1970 = vpow.pop %v1969
      %v1971 = vmul.f32 %v1960, 1.442695
      %v1972 = vpow.pop %v1971
      %v1973 = vmul.f32 %v1961, 1.442695
      %v1974 = vpow.pop %v1973
      %v1975 = vmul.f32 %v1962, 1.442695
      %v1976 = vpow.pop %v1975
      %v1977 = vmul.f32 %v1963, 1.442695
      %v1978 = vpow.pop %v1977
      %v1979 = vmul.f32 %v1964, 1.442695
      %v1980 = vpow.pop %v1979
      %v1981 = vsel %vm1016, %v1966, 0.0
      %1982 = vadd.xlane.f32.xlu0 %v1981
      %v1983 = vpop.xlane.xlu0 %1982
      %v1984 = vsel %vm1016, %v1968, 0.0
      %1985 = vadd.xlane.f32.xlu0 %v1984
      %v1986 = vpop.xlane.xlu0 %1985
      %v1987 = vsel %vm1016, %v1970, 0.0
      %1988 = vadd.xlane.f32.xlu0 %v1987
      %v1989 = vpop.xlane.xlu0 %1988
      %v1990 = vsel %vm1016, %v1972, 0.0
      %1991 = vadd.xlane.f32.xlu0 %v1990
      %v1992 = vpop.xlane.xlu0 %1991
      %v1993 = vsel %vm1016, %v1974, 0.0
      %1994 = vadd.xlane.f32.xlu0 %v1993
      %v1995 = vpop.xlane.xlu0 %1994
      %v1996 = vsel %vm1016, %v1976, 0.0
      %1997 = vadd.xlane.f32.xlu0 %v1996
      %v1998 = vpop.xlane.xlu0 %1997
      %v1999 = vsel %vm1016, %v1978, 0.0
      %2000 = vadd.xlane.f32.xlu0 %v1999
      %v2001 = vpop.xlane.xlu0 %2000
      %v2002 = vsel %vm1016, %v1980, 0.0
      %2003 = vadd.xlane.f32.xlu0 %v2002
      %v2004 = vpop.xlane.xlu0 %2003
      %v2005 = vrcp.pop %v1983
      %v2006 = vrcp.pop %v1986
      %v2007 = vrcp.pop %v1989
      %v2008 = vrcp.pop %v1992
      %v2009 = vrcp.pop %v1995
      %v2010 = vrcp.pop %v1998
      %v2011 = vrcp.pop %v2001
      %v2012 = vrcp.pop %v2004
      %v2013 = vpack.c.bf16 %v1968, %v1966
      %v2014 = vpack.c.bf16 %v1972, %v1970
      %v2015 = vpack.c.bf16 %v1976, %v1974
      %v2016 = vpack.c.bf16 %v1980, %v1978
      %2017 = vrot.lane.b32.xlu0 %v910, 40
      %v2018 = vpop.permute.xlu0 %2017
      %2019 = vrot.lane.b32.xlu0 %v911, 40
      %v2020 = vpop.permute.xlu0 %2019
      %2021 = vrot.lane.b32.xlu0 %v912, 40
      %v2022 = vpop.permute.xlu0 %2021
      %2023 = vrot.lane.b32.xlu0 %v913, 40
      %v2024 = vpop.permute.xlu0 %2023
      %v2030 = vsel %vm1016, %v2013, 0
      %v2033 = vsel %vm1016, %v2014, 0
      %v2036 = vsel %vm1016, %v2015, 0
      %v2039 = vsel %vm1016, %v2016, 0
      %2041 = vmatprep.subr.bf16.mxu0 0
      %2042 = vmatpush1.bf16.msra.mxu0 %v2018
      %2043 = vmatprep.subr.bf16.mxu0 0
      %2044 = vmatpush1.bf16.msra.mxu0 %v2020
      %2045 = vmatprep.subr.bf16.mxu0 0
      %2046 = vmatpush1.bf16.msra.mxu0 %v2022
      %2047 = vmatprep.subr.bf16.mxu0 0
      %2048 = vmatpush1.bf16.msra.mxu0 %v2024
      %2049 = vmatprep.subr.bf16.mxu0 0
      %2050 = vmatpush1.bf16.msra.mxu0 0
      %2051 = vmatprep.subr.bf16.mxu0 0
      %2052 = vmatpush1.bf16.msra.mxu0 0
      %2053 = vmatprep.subr.bf16.mxu0 0
      %2054 = vmatpush1.bf16.msra.mxu0 0
      %2055 = vmatprep.subr.bf16.mxu0 0
      %2056 = vmatpush1.bf16.msra.mxu0 0
      %2057 = vmatprep.subr.bf16.mxu0 0
      %2058 = vmatpush1.bf16.msra.mxu0 0
      %2059 = vmatprep.subr.bf16.mxu0 0
      %2060 = vmatpush1.bf16.msra.mxu0 0
      %2061 = vmatprep.subr.bf16.mxu0 0
      %2062 = vmatpush1.bf16.msra.mxu0 0
      %2063 = vmatprep.subr.bf16.mxu0 0
      %2064 = vmatpush1.bf16.msra.mxu0 0
      %2065 = vmatprep.subr.bf16.mxu0 0
      %2066 = vmatpush1.bf16.msra.mxu0 0
      %2067 = vmatprep.subr.bf16.mxu0 0
      %2068 = vmatpush1.bf16.msra.mxu0 0
      %2069 = vmatprep.subr.bf16.mxu0 0
      %2070 = vmatpush1.bf16.msra.mxu0 0
      %2071 = vmatprep.subr.bf16.mxu0 0
      %2072 = vmatpush1.bf16.msra.mxu0 0
      %2073 = vmatprep.mubr.bf16.mxu0 0
      %2074 = vmatmul.mubr.bf16.gmra.mrb[0].mxu0 %v2030
      %v2075 = vpop.f32.mrb[0].mxu0
      %v2076 = vadd.f32 0.0, %v2075
      %v2077 = vpop.f32.mrb[0].mxu0
      %v2078 = vpop.f32.mrb[0].mxu0
      %v2079 = vadd.f32 0.0, %v2078
      %v2080 = vpop.f32.mrb[0].mxu0
      %2081 = vmatprep.mubr.bf16.mxu0 0
      %2082 = vmatmul.mubr.bf16.gmra.mrb[0].mxu0 %v2033
      %v2083 = vpop.f32.mrb[0].mxu0
      %v2084 = vadd.f32 0.0, %v2083
      %v2085 = vpop.f32.mrb[0].mxu0
      %v2086 = vpop.f32.mrb[0].mxu0
      %v2087 = vadd.f32 0.0, %v2086
      %v2088 = vpop.f32.mrb[0].mxu0
      %2089 = vmatprep.mubr.bf16.mxu0 0
      %2090 = vmatmul.mubr.bf16.gmra.mrb[0].mxu0 %v2036
      %v2091 = vpop.f32.mrb[0].mxu0
      %v2092 = vadd.f32 0.0, %v2091
      %v2093 = vpop.f32.mrb[0].mxu0
      %v2094 = vpop.f32.mrb[0].mxu0
      %v2095 = vadd.f32 0.0, %v2094
      %v2096 = vpop.f32.mrb[0].mxu0
      %2097 = vmatprep.mubr.bf16.mxu0 0
      %2098 = vmatmul.mubr.bf16.gmra.mrb[0].mxu0 %v2039
      %v2099 = vpop.f32.mrb[0].mxu0
      %v2100 = vadd.f32 0.0, %v2099
      %v2101 = vpop.f32.mrb[0].mxu0
      %v2102 = vpop.f32.mrb[0].mxu0
      %v2103 = vadd.f32 0.0, %v2102
      %v2104 = vpop.f32.mrb[0].mxu0
      %2105 = vdwg.mxu0
      %v2106 = vmul.f32 %v2076, %v2005
      %v2107 = vmul.f32 %v2079, %v2006
      %v2108 = vmul.f32 %v2084, %v2007
      %v2109 = vmul.f32 %v2087, %v2008
      %v2110 = vmul.f32 %v2092, %v2009
      %v2111 = vmul.f32 %v2095, %v2010
      %v2112 = vmul.f32 %v2100, %v2011
      %v2113 = vmul.f32 %v2103, %v2012
      %v2114 = vpack.c.bf16 %v2107, %v2106
      %v2115 = vpack.c.bf16 %v2109, %v2108
      %v2116 = vpack.c.bf16 %v2111, %v2110
      %v2117 = vpack.c.bf16 %v2113, %v2112
      %2122 = vrot.lane.b32.xlu0 %v2114, 24
      %v2123 = vpop.permute.xlu0 %2122
      %2124 = vrot.lane.b32.xlu0 %v2115, 24
      %v2125 = vpop.permute.xlu0 %2124
      %2126 = vrot.lane.b32.xlu0 %v2116, 24
      %v2127 = vpop.permute.xlu0 %2126
      %2128 = vrot.lane.b32.xlu0 %v2117, 24
      %v2129 = vpop.permute.xlu0 %2128
      %vm2134 = vcmask 261312
      %2135 = vst.msk [vmem:[#allocation2] sm:$0xff] %vm2134, %v2123
      %2136 = vst.msk [vmem:[#allocation2 + $0x8] sm:$0xff] %vm2134, %v2125
      %2137 = vst.msk [vmem:[#allocation2 + $0x10] sm:$0xff] %vm2134, %v2127
      %2138 = vst.msk [vmem:[#allocation2 + $0x18] sm:$0xff] %vm2134, %v2129
      %v2139 = vld [vmem:[#allocation2] sm:$0xff]
      %v2140 = vld [vmem:[#allocation2 + $0x8] sm:$0xff]
      %v2141 = vld [vmem:[#allocation2 + $0x10] sm:$0xff]
      %v2142 = vld [vmem:[#allocation2 + $0x18] sm:$0xff]
      %v2143 = vld [vmem:[%s473] sm:$0xf]
      %v2144 = vld [vmem:[%s473 + $0x4] sm:$0xf]
      %v2145 = vld [vmem:[%s473 + $0x8] sm:$0xf]
      %v2146 = vld [vmem:[%s473 + $0xc] sm:$0xf]
      %v2147 = vld [vmem:[%s476] sm:$0x1]
      %v2149 = vlaneseq
      %v2150 = vshrl.u32 %v2149, 7
      %v2151 = vsub.s32 0, %v2150
      %v2152 = vrot.slane %v2147, %v2151
      %v2158 = vunpack.c.l.b16 %v2143
      %v2159 = vunpack.c.l.b16 %v2144
      %v2160 = vunpack.c.l.b16 %v2145
      %v2161 = vunpack.c.l.b16 %v2146
      %v2162 = vpack.c.b16 %v2159, %v2158
      %v2163 = vpack.c.b16 %v2161, %v2160
      %v2167 = vsel %vm832, %v2139, 0
      %v2170 = vsel %vm832, %v2140, 0
      %v2173 = vsel %vm832, %v2141, 0
      %v2176 = vsel %vm832, %v2142, 0
      %2178 = vmatprep.subr.bf16.mxu0 0
      %2179 = vmatpush1.bf16.msra.mxu0 %v2162
      %2180 = vmatprep.subr.bf16.mxu0 0
      %2181 = vmatpush1.bf16.msra.mxu0 %v2163
      %2182 = vmatprep.subr.bf16.mxu0 0
      %2183 = vmatpush1.bf16.msra.mxu0 0
      %2184 = vmatprep.subr.bf16.mxu0 0
      %2185 = vmatpush1.bf16.msra.mxu0 0
      %2186 = vmatprep.subr.bf16.mxu0 0
      %2187 = vmatpush1.bf16.msra.mxu0 0
      %2188 = vmatprep.subr.bf16.mxu0 0
      %2189 = vmatpush1.bf16.msra.mxu0 0
      %2190 = vmatprep.subr.bf16.mxu0 0
      %2191 = vmatpush1.bf16.msra.mxu0 0
      %2192 = vmatprep.subr.bf16.mxu0 0
      %2193 = vmatpush1.bf16.msra.mxu0 0
      %2194 = vmatprep.subr.bf16.mxu0 0
      %2195 = vmatpush1.bf16.msra.mxu0 0
      %2196 = vmatprep.subr.bf16.mxu0 0
      %2197 = vmatpush1.bf16.msra.mxu0 0
      %2198 = vmatprep.subr.bf16.mxu0 0
      %2199 = vmatpush1.bf16.msra.mxu0 0
      %2200 = vmatprep.subr.bf16.mxu0 0
      %2201 = vmatpush1.bf16.msra.mxu0 0
      %2202 = vmatprep.subr.bf16.mxu0 0
      %2203 = vmatpush1.bf16.msra.mxu0 0
      %2204 = vmatprep.subr.bf16.mxu0 0
      %2205 = vmatpush1.bf16.msra.mxu0 0
      %2206 = vmatprep.subr.bf16.mxu0 0
      %2207 = vmatpush1.bf16.msra.mxu0 0
      %2208 = vmatprep.subr.bf16.mxu0 0
      %2209 = vmatpush1.bf16.msra.mxu0 0
      %2210 = vmatprep.mubr.bf16.mxu0 0
      %2211 = vmatmul.mubr.bf16.gmra.mrb[0].mxu0 %v2167
      %v2212 = vpop.f32.mrb[0].mxu0
      %v2213 = vadd.f32 %v2152, %v2212
      %v2214 = vpop.f32.mrb[0].mxu0
      %v2215 = vpop.f32.mrb[0].mxu0
      %v2216 = vadd.f32 %v2152, %v2215
      %v2217 = vpop.f32.mrb[0].mxu0
      %2218 = vmatprep.mubr.bf16.mxu0 0
      %2219 = vmatmul.mubr.bf16.gmra.mrb[0].mxu0 %v2170
      %v2220 = vpop.f32.mrb[0].mxu0
      %v2221 = vadd.f32 %v2152, %v2220
      %v2222 = vpop.f32.mrb[0].mxu0
      %v2223 = vpop.f32.mrb[0].mxu0
      %v2224 = vadd.f32 %v2152, %v2223
      %v2225 = vpop.f32.mrb[0].mxu0
      %2226 = vmatprep.mubr.bf16.mxu0 0
      %2227 = vmatmul.mubr.bf16.gmra.mrb[0].mxu0 %v2173
      %v2228 = vpop.f32.mrb[0].mxu0
      %v2229 = vadd.f32 %v2152, %v2228
      %v2230 = vpop.f32.mrb[0].mxu0
      %v2231 = vpop.f32.mrb[0].mxu0
      %v2232 = vadd.f32 %v2152, %v2231
      %v2233 = vpop.f32.mrb[0].mxu0
      %2234 = vmatprep.mubr.bf16.mxu0 0
      %2235 = vmatmul.mubr.bf16.gmra.mrb[0].mxu0 %v2176
      %v2236 = vpop.f32.mrb[0].mxu0
      %v2237 = vadd.f32 %v2152, %v2236
      %v2238 = vpop.f32.mrb[0].mxu0
      %v2239 = vpop.f32.mrb[0].mxu0
      %v2240 = vadd.f32 %v2152, %v2239
      %v2241 = vpop.f32.mrb[0].mxu0
      %2242 = vdwg.mxu0
      %v2243 = vadd.f32 %v2213, %v797
      %v2244 = vadd.f32 %v2216, %v798
      %v2245 = vadd.f32 %v2221, %v799
      %v2246 = vadd.f32 %v2224, %v800
      %v2247 = vadd.f32 %v2229, %v801
      %v2248 = vadd.f32 %v2232, %v802
      %v2249 = vadd.f32 %v2237, %v803
      %v2250 = vadd.f32 %v2240, %v804
      %v2251 = vpack.c.bf16 %v2244, %v2243
      %v2252 = vpack.c.bf16 %v2246, %v2245
      %v2253 = vpack.c.bf16 %v2248, %v2247
      %v2254 = vpack.c.bf16 %v2250, %v2249
      %v2255 = vld [vmem:[%s481] sm:$0xf]
      %v2256 = vld [vmem:[%s481 + $0x4] sm:$0xf]
      %v2257 = vld [vmem:[%s481 + $0x8] sm:$0xf]
      %v2258 = vld [vmem:[%s481 + $0xc] sm:$0xf]
      %v2263 = vunpack.c.l.b16 %v2255
      %v2264 = vunpack.c.l.b16 %v2256
      %v2265 = vunpack.c.l.b16 %v2257
      %v2266 = vunpack.c.l.b16 %v2258
      %v2267 = vpack.c.b16 %v2264, %v2263
      %v2268 = vpack.c.b16 %v2266, %v2265
      %v2272 = vsel %vm832, %v2251, 0
      %v2275 = vsel %vm832, %v2252, 0
      %v2278 = vsel %vm832, %v2253, 0
      %v2281 = vsel %vm832, %v2254, 0
      %2283 = vmatprep.subr.bf16.mxu0 0
      %2284 = vmatpush1.bf16.msra.mxu0 %v2267
      %2285 = vmatprep.subr.bf16.mxu0 0
      %2286 = vmatpush1.bf16.msra.mxu0 %v2268
      %2287 = vmatprep.subr.bf16.mxu0 0
      %2288 = vmatpush1.bf16.msra.mxu0 0
      %2289 = vmatprep.subr.bf16.mxu0 0
      %2290 = vmatpush1.bf16.msra.mxu0 0
      %2291 = vmatprep.subr.bf16.mxu0 0
      %2292 = vmatpush1.bf16.msra.mxu0 0
      %2293 = vmatprep.subr.bf16.mxu0 0
      %2294 = vmatpush1.bf16.msra.mxu0 0
      %2295 = vmatprep.subr.bf16.mxu0 0
      %2296 = vmatpush1.bf16.msra.mxu0 0
      %2297 = vmatprep.subr.bf16.mxu0 0
      %2298 = vmatpush1.bf16.msra.mxu0 0
      %2299 = vmatprep.subr.bf16.mxu0 0
      %2300 = vmatpush1.bf16.msra.mxu0 0
      %2301 = vmatprep.subr.bf16.mxu0 0
      %2302 = vmatpush1.bf16.msra.mxu0 0
      %2303 = vmatprep.subr.bf16.mxu0 0
      %2304 = vmatpush1.bf16.msra.mxu0 0
      %2305 = vmatprep.subr.bf16.mxu0 0
      %2306 = vmatpush1.bf16.msra.mxu0 0
      %2307 = vmatprep.subr.bf16.mxu0 0
      %2308 = vmatpush1.bf16.msra.mxu0 0
      %2309 = vmatprep.subr.bf16.mxu0 0
      %2310 = vmatpush1.bf16.msra.mxu0 0
      %2311 = vmatprep.subr.bf16.mxu0 0
      %2312 = vmatpush1.bf16.msra.mxu0 0
      %2313 = vmatprep.subr.bf16.mxu0 0
      %2314 = vmatpush1.bf16.msra.mxu0 0
      %2315 = vmatprep.mubr.bf16.mxu0 0
      %2316 = vmatmul.mubr.bf16.gmra.mrb[0].mxu0 %v2272
      %v2317 = vpop.f32.mrb[0].mxu0
      %v2318 = vadd.f32 %v2243, %v2317
      %v2319 = vpop.f32.mrb[0].mxu0
      %v2320 = vpop.f32.mrb[0].mxu0
      %v2321 = vadd.f32 %v2244, %v2320
      %v2322 = vpop.f32.mrb[0].mxu0
      %2323 = vmatprep.mubr.bf16.mxu0 0
      %2324 = vmatmul.mubr.bf16.gmra.mrb[0].mxu0 %v2275
      %v2325 = vpop.f32.mrb[0].mxu0
      %v2326 = vadd.f32 %v2245, %v2325
      %v2327 = vpop.f32.mrb[0].mxu0
      %v2328 = vpop.f32.mrb[0].mxu0
      %v2329 = vadd.f32 %v2246, %v2328
      %v2330 = vpop.f32.mrb[0].mxu0
      %2331 = vmatprep.mubr.bf16.mxu0 0
      %2332 = vmatmul.mubr.bf16.gmra.mrb[0].mxu0 %v2278
      %v2333 = vpop.f32.mrb[0].mxu0
      %v2334 = vadd.f32 %v2247, %v2333
      %v2335 = vpop.f32.mrb[0].mxu0
      %v2336 = vpop.f32.mrb[0].mxu0
      %v2337 = vadd.f32 %v2248, %v2336
      %v2338 = vpop.f32.mrb[0].mxu0
      %2339 = vmatprep.mubr.bf16.mxu0 0
      %2340 = vmatmul.mubr.bf16.gmra.mrb[0].mxu0 %v2281
      %v2341 = vpop.f32.mrb[0].mxu0
      %v2342 = vadd.f32 %v2249, %v2341
      %v2343 = vpop.f32.mrb[0].mxu0
      %v2344 = vpop.f32.mrb[0].mxu0
      %v2345 = vadd.f32 %v2250, %v2344
      %v2346 = vpop.f32.mrb[0].mxu0
      %2347 = vdwg.mxu0
      %2348 = vst.msk [vmem:[%s486] sm:$0xff] %vm832, %v2318
      %2349 = vst.msk [vmem:[%s486 + $0x8] sm:$0xff] %vm832, %v2321
      %2350 = vst.msk [vmem:[%s486 + $0x10] sm:$0xff] %vm832, %v2326
      %2351 = vst.msk [vmem:[%s486 + $0x18] sm:$0xff] %vm832, %v2329
      %2352 = vst.msk [vmem:[%s486 + $0x20] sm:$0xff] %vm832, %v2334
      %2353 = vst.msk [vmem:[%s486 + $0x28] sm:$0xff] %vm832, %v2337
      %2354 = vst.msk [vmem:[%s486 + $0x30] sm:$0xff] %vm832, %v2342
      %2355 = vst.msk [vmem:[%s486 + $0x38] sm:$0xff] %vm832, %v2345
      %p2356 = scmp.lt.s32.totalorder %s26, 1
      %s2357 = scalar_select %p2356, %s26, 1
      %s2358 = smul.addr %s2357, 8
      %s2359 = smul.addr %s2358, 8
      %s2360 = scalar_lea.vmem %s11, %s2359
      // Predicated region
      $region69: #{tpu_custom_call.1} parent=63 // pred_check
        %p2361 = pneg %p313
      $region70: #{tpu_custom_call.1} parent=63 // pred_check_branch
        %2363 = sbr.rel (%p2361) target = $region72
      $region71: #{tpu_custom_call.1} parent=63 // pred_region
        _
      $region72: #{tpu_custom_call.1} parent=63 // pred_fallthru
        _
    $region64: #{tpu_custom_call.1} parent=5 // pred_fallthru
      _
    %p2364 = scmp.le.s32.totalorder 2, %s17
    // Predicated region
    $region73: #{tpu_custom_call.1} parent=5 // pred_check
      %p2365 = pneg %p2364
    $region74: #{tpu_custom_call.1} parent=5 // pred_check_branch
      %2367 = sbr.rel (%p2365) target = $region76
    $region75: #{tpu_custom_call.1} parent=5 // pred_region
      %s2368 = ssub.s32 %s17, 2
      // Predicated region
      $region77: #{tpu_custom_call.1} parent=75 // pred_check
        %p2369 = pneg %p319
      $region78: #{tpu_custom_call.1} parent=75 // pred_check_branch
        %2371 = sbr.rel (%p2369) target = $region80
      $region79: #{tpu_custom_call.1} parent=75 // pred_region
        %p2372 = scmp.lt.s32.totalorder %s28, 1
        %s2373 = scalar_select %p2372, %s28, 1
        %s2374 = smul.addr %s2373, 8
        %s2375 = smul.addr %s2374, 8
        %s2376 = scalar_lea.vmem %s11, %s2375
      $region80: #{tpu_custom_call.1} parent=75 // pred_fallthru
        _
    $region76: #{tpu_custom_call.1} parent=5 // pred_fallthru
      _
  $region6: #{tpu_custom_call.1} parent=0 // loop_footer
    %s21 = sadd.s32 1, %s17
  $region7: #{tpu_custom_call.1} parent=0 // loop_footer_branch
    %16 = sbr.rel target = $region3
  $region8: #{tpu_custom_call.1} parent=0 // loop_exit
    _

</llo_original>
